<compile_context>
chip_gen: v7x
topology: tpu7x:2x2x1
jax: 0.10.0
libtpu: 0.0.40
codegen_flags: <defaults>
</compile_context>

<pallas_src>
import functools
import math

import jax
import jax.numpy as jnp
from jax.experimental import pallas as pl
from jax.experimental.pallas import tpu as pltpu

_LANE = 128      # lane tile (last dim)
_SUBLANE = 16    # bf16 sublane tile (covers f32's 8 as well)


def _round_up(a, b):
    return (a + b - 1) // b * b


def _tpu_vmem_bytes():
    """Physical VMEM per core; conservative fallback if the query fails."""
    try:
        info = pltpu.get_tpu_info()
        for attr in ("vmem_capacity_bytes", "vmem_bytes", "vmem_size_bytes"):
            v = getattr(info, attr, None)
            if v:
                return int(v)
    except Exception:
        pass
    return 64 * 1024 * 1024


# ---------------------------------------------------------------------------
# Kernels
# ---------------------------------------------------------------------------

def _tap_kernel(x_ref, w_ref, b_ref, o_ref, *, t, row_tile, qw_p):
    """Large-Cin path: one output-row tile of one sub-pixel phase.

    x_ref: (Hp, Wp, Cin_p)        bf16  resident padded input image (this batch)
    w_ref: (T*T, Cin_p, Cout_p)   bf16  flipped/scaled taps of this phase
    b_ref: (1, Cout_p)            f32
    o_ref: (row_tile*Qw_p, Cout_p)      output rows of this phase (flattened M)
    """
    c_in_p = x_ref.shape[-1]
    m = row_tile * qw_p
    row0 = pl.program_id(2) * row_tile

    acc = jnp.zeros((m, o_ref.shape[-1]), jnp.float32)
    for a in range(t):
        for b2 in range(t):
            # Window of the un-dilated input; tile-aligned collapse to 2-D M.
            window = x_ref[pl.ds(row0 + a, row_tile), b2:b2 + qw_p, :]
            acc = acc + jnp.dot(window.reshape(m, c_in_p), w_ref[a * t + b2],
                                preferred_element_type=jnp.float32)
    o_ref[...] = (acc + b_ref[...]).astype(o_ref.dtype)


def _mm_kernel(p_ref, w_ref, b_ref, o_ref):
    """Small-Cin path: tap-packed patch @ per-phase weight (single MXU call).

    p_ref: (row_tile*Qw_p, K_p)   bf16  tap-packed patch rows (phase independent)
    w_ref: (K_p, Cout_p)          bf16
    b_ref: (1, Cout_p)            f32
    o_ref: (row_tile*Qw_p, Cout_p)
    """
    acc = jnp.dot(p_ref[...], w_ref[...], preferred_element_type=jnp.float32)
    o_ref[...] = (acc + b_ref[...]).astype(o_ref.dtype)


# ---------------------------------------------------------------------------
# Wrapper
# ---------------------------------------------------------------------------

def equal_transpose_conv2d(x, weight, bias=None, *, stride=1, padding=0,
                           out_dtype=jnp.float32):
    """Forward of EqualTransposeConv2d (NCHW in / NCHW out).

    Matches torch: F.conv_transpose2d(x, weight.transpose(0,1) * scale, bias,
    stride=stride, padding=padding), weight shape (Cout, Cin, k, k).
    """
    n, c_in, h, w = x.shape
    c_out, c_in_w, k, k2 = weight.shape
    assert c_in == c_in_w and k == k2
    s = int(stride)
    p = int(padding)
    assert s >= 1 and p >= 0
    scale = 1.0 / math.sqrt(c_in * k * k)

    h_out = (h - 1) * s - 2 * p + k
    w_out = (w - 1) * s - 2 * p + k

    # --- stride-phase (sub-pixel) decomposition ------------------------------
    # out_full[s*q + r, s*qw + rw] =
    #     sum_{a,b,c} x_pad[q+a, qw+b, c] * Wt[c, :, r + s*(T-1-a), rw + s*(T-1-b)]
    # with T = ceil(k/s) taps per axis per phase, x_pad = x zero-padded by T-1,
    # and out[i, j] = out_full[i + p, j + p].  No dilation zeros anywhere.
    t = -(-k // s)                       # taps per phase per spatial axis
    num_phases = s * s
    q_rows = h + t - 1                   # per-phase output rows
    q_cols = w + t - 1                   # per-phase output cols

    # Flipped / scaled / phase-split weights: (s, s, T, T, Cin, Cout), f32.
    w_hwio = (scale * jnp.transpose(weight, (2, 3, 1, 0))).astype(jnp.float32)
    w_phase = jnp.zeros((s, s, t, t, c_in, c_out), jnp.float32)
    for r in range(s):
        for rw in range(s):
            for a in range(t):
                for b2 in range(t):
                    kh = r + s * (t - 1 - a)
                    kw = rw + s * (t - 1 - b2)
                    if kh < k and kw < k:
                        w_phase = w_phase.at[r, rw, a, b2].set(w_hwio[kh, kw])

    if bias is None:
        bias = jnp.zeros((c_out,), jnp.float32)
    c_out_p = _round_up(c_out, _LANE)
    b_mat = jnp.pad(bias.astype(jnp.float32),
                    (0, c_out_p - c_out)).reshape(1, c_out_p)

    # --- tiling (generation aware) -------------------------------------------
    vmem_bytes = _tpu_vmem_bytes()
    target_m = 1024 if vmem_bytes >= 128 * 1024 * 1024 else 512   # v5e/v6e vs v7x
    qw_p = _round_up(q_cols, _SUBLANE)
    row_tile = max(1, min(q_rows, -(-target_m // qw_p)))
    q_p = _round_up(q_rows, row_tile)

    compiler_params = pltpu.CompilerParams(
        dimension_semantics=("parallel", "parallel", "parallel"),
        # ~48 MiB on v7x (64 MiB physical), ~96 MiB on v5e/v6e (128 MiB).
        vmem_limit_bytes=int(min(vmem_bytes * 3 // 4, 100 * 1024 * 1024)))

    x_nhwc = jnp.transpose(x, (0, 2, 3, 1))
    out_shape = jax.ShapeDtypeStruct((n * num_phases, q_p * qw_p, c_out_p),
                                     out_dtype)

    if c_in >= 64:
        # ---- large-Cin fast path: per-tap accumulating MXU matmuls ----------
        c_in_p = _round_up(c_in, _LANE)
        hp = q_p + t - 1
        wpad = qw_p + t - 1
        x_pad = jnp.pad(
            x_nhwc.astype(jnp.bfloat16),
            ((0, 0),
             (t - 1, hp - (h + t - 1)),
             (t - 1, wpad - (w + t - 1)),
             (0, c_in_p - c_in)))
        w_tap = jnp.pad(w_phase, ((0, 0), (0, 0), (0, 0), (0, 0),
                                  (0, c_in_p - c_in), (0, c_out_p - c_out)))
        w_tap = w_tap.reshape(num_phases * t * t, c_in_p,
                              c_out_p).astype(jnp.bfloat16)
        kernel = functools.partial(_tap_kernel, t=t, row_tile=row_tile,
                                   qw_p=qw_p)

        def run(single_buffer):
            mode = (dict(pipeline_mode=pl.Buffered(buffer_count=1))
                    if single_buffer else {})
            return pl.pallas_call(
                kernel,
                out_shape=out_shape,
                grid_spec=pltpu.PrefetchScalarGridSpec(
                    num_scalar_prefetch=0,
                    grid=(n, num_phases, q_p // row_tile),
                    in_specs=[
                        # Whole (un-dilated) padded image: resident per batch,
                        # single-buffered (constant index over phase/row axes).
                        pl.BlockSpec((None, hp, wpad, c_in_p),
                                     lambda b, ph, r: (b, 0, 0, 0), **mode),
                        # Per-phase taps: change only on the phase axis.
                        pl.BlockSpec((t * t, c_in_p, c_out_p),
                                     lambda b, ph, r: (ph, 0, 0), **mode),
                        pl.BlockSpec((1, c_out_p),
                                     lambda b, ph, r: (0, 0), **mode),
                    ],
                    out_specs=pl.BlockSpec(
                        (None, row_tile * qw_p, c_out_p),
                        lambda b, ph, r: (b * num_phases + ph, r, 0)),
                ),
                compiler_params=compiler_params,
            )(x_pad, w_tap, b_mat)

        try:
            phase_out = run(True)
        except Exception:   # pl.Buffered(1) unsupported on this jax version
            phase_out = run(False)
    else:
        # ---- small-Cin path: tap-packed im2col (XLA, tiny) + lane-dense matmul
        kk = t * t * c_in
        k_p = _round_up(kk, _LANE)
        x_sp = jnp.pad(x_nhwc, ((0, 0), (t - 1, t - 1), (t - 1, t - 1), (0, 0)))
        taps = [x_sp[:, a:a + q_rows, b2:b2 + q_cols, :]
                for a in range(t) for b2 in range(t)]
        patch = jnp.concatenate(taps, axis=-1)            # (N, Q, Qw, T*T*Cin)
        patch = jnp.pad(patch, ((0, 0), (0, q_p - q_rows),
                                (0, qw_p - q_cols), (0, k_p - kk)))
        patch = patch.astype(jnp.bfloat16).reshape(n, q_p * qw_p, k_p)
        w_mm = jnp.pad(w_phase.reshape(num_phases, kk, c_out),
                       ((0, 0), (0, k_p - kk),
                        (0, c_out_p - c_out))).astype(jnp.bfloat16)

        def run(single_buffer):
            mode = (dict(pipeline_mode=pl.Buffered(buffer_count=1))
                    if single_buffer else {})
            return pl.pallas_call(
                _mm_kernel,
                out_shape=out_shape,
                grid_spec=pltpu.PrefetchScalarGridSpec(
                    num_scalar_prefetch=0,
                    grid=(n, q_p // row_tile, num_phases),
                    in_specs=[
                        # Patch tile is phase independent -> resident across the
                        # innermost phase axis (default double buffering keeps
                        # the next row tile's DMA pipelined).
                        pl.BlockSpec((None, row_tile * qw_p, k_p),
                                     lambda b, r, ph: (b, r, 0)),
                        pl.BlockSpec((None, k_p, c_out_p),
                                     lambda b, r, ph: (ph, 0, 0)),
                        pl.BlockSpec((1, c_out_p),
                                     lambda b, r, ph: (0, 0), **mode),
                    ],
                    out_specs=pl.BlockSpec(
                        (None, row_tile * qw_p, c_out_p),
                        lambda b, r, ph: (b * num_phases + ph, r, 0)),
                ),
                compiler_params=compiler_params,
            )(patch, w_mm, b_mat)

        try:
            phase_out = run(True)
        except Exception:
            phase_out = run(False)

    # --- interleave phases, crop, back to NCHW (XLA glue) --------------------
    ph_out = phase_out.reshape(n, s, s, q_p, qw_p, c_out_p)
    ph_out = ph_out[:, :, :, :q_rows, :q_cols, :c_out]
    full = jnp.transpose(ph_out, (0, 3, 1, 4, 2, 5)).reshape(
        n, q_rows * s, q_cols * s, c_out)
    out_nhwc = full[:, p:p + h_out, p:p + w_out, :]
    # NCHW to match the torch module contract; keep NHWC / bf16 out_dtype if a
    # downstream consumer can fuse it and skip this extra HBM round trip.
    return jnp.transpose(out_nhwc, (0, 3, 1, 2))


# ---------------------------------------------------------------------------
# Reference + self-test
# ---------------------------------------------------------------------------

def _reference(x, weight, bias, *, stride, padding, cast_bf16=False):
    """Pure-XLA reference for conv_transpose2d(x, weight.T(0,1)*scale, ...)."""
    c_out, c_in, k, _ = weight.shape
    scale = 1.0 / math.sqrt(c_in * k * k)
    w_conv = scale * weight[:, :, ::-1, ::-1]          # (Cout, Cin, k, k)
    if cast_bf16:  # match the kernel's bf16 operand rounding (f32 accumulation)
        x = x.astype(jnp.bfloat16).astype(jnp.float32)
        w_conv = w_conv.astype(jnp.bfloat16).astype(jnp.float32)
    out = jax.lax.conv_general_dilated(
        x, w_conv, window_strides=(1, 1),
        padding=[(k - 1 - padding, k - 1 - padding)] * 2,
        lhs_dilation=(stride, stride),
        dimension_numbers=("NCHW", "OIHW", "NCHW"),
        precision=jax.lax.Precision.HIGHEST)
    return out + bias[None, :, None, None]


if __name__ == "__main__":
    key = jax.random.PRNGKey(0)

    configs = [
        # (N, Cin, H, W, Cout, k, stride, padding)
        (2, 4, 16, 16, 8, 3, 2, 1),      # spec case: small-Cin path, stride 2
        (2, 128, 8, 8, 128, 3, 2, 1),    # large-Cin per-tap MXU path, stride 2
        (2, 4, 8, 8, 8, 3, 1, 1),        # stride-1 path
    ]
    for idx, (N, C_IN, H, W, C_OUT, K, STRIDE, PADDING) in enumerate(configs):
        kx, kw_, key = jax.random.split(key, 3)
        x = jax.random.normal(kx, (N, C_IN, H, W), jnp.float32)
        # Deterministic params matching the module's __init__:
        weight = jax.random.normal(kw_, (C_OUT, C_IN, K, K), jnp.float32)  # randn
        bias = jnp.zeros((C_OUT,), jnp.float32)                            # zeros

        out = equal_transpose_conv2d(x, weight, bias,
                                     stride=STRIDE, padding=PADDING)
        out = jax.block_until_ready(out)

        h_out = (H - 1) * STRIDE - 2 * PADDING + K
        w_out = (W - 1) * STRIDE - 2 * PADDING + K
        assert out.shape == (N, C_OUT, h_out, w_out), (idx, out.shape)

        ref = _reference(x, weight, bias, stride=STRIDE, padding=PADDING,
                         cast_bf16=True)
        err = float(jnp.max(jnp.abs(out - ref)))
        if not jnp.allclose(out, ref, atol=2e-2, rtol=2e-2):
            raise AssertionError(
                f"config {idx}: mismatch vs reference, max abs err = {err}")

    print("KERNEL_OK")
</pallas_src>

<mosaic_0001>
module attributes {stable_mosaic.version = 11 : i64} {
  func.func @_mm_kernel(%arg0: i32, %arg1: i32, %arg2: i32, %arg3: memref<1x512x128xbf16, #tpu.memory_space<vmem>>, %arg4: memref<1x128x128xbf16, #tpu.memory_space<vmem>>, %arg5: memref<1x128xf32, #tpu.memory_space<vmem>>, %arg6: memref<1x512x128xf32, #tpu.memory_space<vmem>>) attributes {dimension_semantics = [#tpu.dimension_semantics<parallel>, #tpu.dimension_semantics<parallel>, #tpu.dimension_semantics<parallel>], iteration_bounds = array<i64: 2, 2, 4>, scalar_prefetch = 0 : i64, scratch_operands = 0 : i64, tpu.core_type = #tpu.core_type<tc>, window_params = [{transform_indices = @transform_0, window_bounds = array<i64: 1, 512, 128>}, {transform_indices = @transform_1, window_bounds = array<i64: 1, 128, 128>}, {pipeline_mode = #tpu.pipeline_mode<synchronous>, transform_indices = @transform_2, window_bounds = array<i64: 1, 128>}, {transform_indices = @transform_3, window_bounds = array<i64: 1, 512, 128>}]} {
    %c0 = arith.constant 0 : index
    %c0_0 = arith.constant 0 : index
    %c0_1 = arith.constant 0 : index
    %0 = vector.load %arg3[%c0, %c0_0, %c0_1] : memref<1x512x128xbf16, #tpu.memory_space<vmem>>, vector<1x512x128xbf16>
    %1 = vector.shape_cast %0 : vector<1x512x128xbf16> to vector<512x128xbf16>
    %c0_2 = arith.constant 0 : index
    %c0_3 = arith.constant 0 : index
    %c0_4 = arith.constant 0 : index
    %2 = vector.load %arg4[%c0_2, %c0_3, %c0_4] : memref<1x128x128xbf16, #tpu.memory_space<vmem>>, vector<1x128x128xbf16>
    %3 = vector.shape_cast %2 : vector<1x128x128xbf16> to vector<128x128xbf16>
    %cst = arith.constant dense<0.000000e+00> : vector<512x128xf32>
    %4 = tpu.matmul %1, %3, %cst {dimension_numbers = #tpu.dot_dimension_numbers<[1], [0], [0], [1], [0, 0, 1, 1], [], []>} : vector<512x128xbf16>, vector<128x128xbf16>, vector<512x128xf32> -> vector<512x128xf32>
    %c0_5 = arith.constant 0 : index
    %c0_6 = arith.constant 0 : index
    %5 = vector.load %arg5[%c0_5, %c0_6] : memref<1x128xf32, #tpu.memory_space<vmem>>, vector<1x128xf32>
    %6 = vector.broadcast %5 : vector<1x128xf32> to vector<512x128xf32>
    %7 = arith.addf %4, %6 : vector<512x128xf32>
    %c0_7 = arith.constant 0 : index
    %c0_8 = arith.constant 0 : index
    %c0_9 = arith.constant 0 : index
    %8 = vector.load %arg6[%c0_7, %c0_8, %c0_9] : memref<1x512x128xf32, #tpu.memory_space<vmem>>, vector<1x512x128xf32>
    %9 = vector.shape_cast %8 : vector<1x512x128xf32> to vector<512x128xf32>
    %10 = vector.shape_cast %7 : vector<512x128xf32> to vector<1x512x128xf32>
    tpu.vector_store %arg6[%c0_7, %c0_8, %c0_9], %10 {strides = array<i32>} : memref<1x512x128xf32, #tpu.memory_space<vmem>>, vector<1x512x128xf32>,
    return
  }
  func.func @transform_0(%arg0: i32, %arg1: i32, %arg2: i32) -> (i32, i32, i32) {
    %c0_i32 = arith.constant 0 : i32
    %c0_i32_0 = arith.constant 0 : i32
    return %arg0, %arg1, %c0_i32 : i32, i32, i32
  }
  func.func @transform_1(%arg0: i32, %arg1: i32, %arg2: i32) -> (i32, i32, i32) {
    %c0_i32 = arith.constant 0 : i32
    %c0_i32_0 = arith.constant 0 : i32
    %c0_i32_1 = arith.constant 0 : i32
    return %arg2, %c0_i32, %c0_i32_0 : i32, i32, i32
  }
  func.func @transform_2(%arg0: i32, %arg1: i32, %arg2: i32) -> (i32, i32) {
    %c0_i32 = arith.constant 0 : i32
    %c0_i32_0 = arith.constant 0 : i32
    %c0_i32_1 = arith.constant 0 : i32
    return %c0_i32, %c0_i32_0 : i32, i32
  }
  func.func @transform_3(%arg0: i32, %arg1: i32, %arg2: i32) -> (i32, i32, i32) {
    %c4_i32 = arith.constant 4 : i32
    %0 = arith.muli %arg0, %c4_i32 : i32
    %1 = arith.addi %0, %arg2 : i32
    %c0_i32 = arith.constant 0 : i32
    %c0_i32_0 = arith.constant 0 : i32
    return %1, %arg1, %c0_i32 : i32, i32, i32
  }
}

module attributes {stable_mosaic.version = 11 : i64} {
  func.func @_mm_kernel(%arg0: i32, %arg1: i32, %arg2: i32, %arg3: memref<1x512x128xbf16, #tpu.memory_space<vmem>>, %arg4: memref<1x128x128xbf16, #tpu.memory_space<vmem>>, %arg5: memref<1x128xf32, #tpu.memory_space<vmem>>, %arg6: memref<1x512x128xf32, #tpu.memory_space<vmem>>) attributes {dimension_semantics = [#tpu.dimension_semantics<parallel>, #tpu.dimension_semantics<parallel>, #tpu.dimension_semantics<parallel>], iteration_bounds = array<i64: 2, 2, 4>, scalar_prefetch = 0 : i64, scratch_operands = 0 : i64, tpu.core_type = #tpu.core_type<tc>, window_params = [{transform_indices = @transform_0, window_bounds = array<i64: 1, 512, 128>}, {transform_indices = @transform_1, window_bounds = array<i64: 1, 128, 128>}, {pipeline_mode = #tpu.pipeline_mode<synchronous>, transform_indices = @transform_2, window_bounds = array<i64: 1, 128>}, {transform_indices = @transform_3, window_bounds = array<i64: 1, 512, 128>}]} {
    %c0 = arith.constant 0 : index
    %c0_0 = arith.constant 0 : index
    %c0_1 = arith.constant 0 : index
    %0 = vector.load %arg3[%c0, %c0_0, %c0_1] : memref<1x512x128xbf16, #tpu.memory_space<vmem>>, vector<1x512x128xbf16>
    %1 = vector.shape_cast %0 : vector<1x512x128xbf16> to vector<512x128xbf16>
    %c0_2 = arith.constant 0 : index
    %c0_3 = arith.constant 0 : index
    %c0_4 = arith.constant 0 : index
    %2 = vector.load %arg4[%c0_2, %c0_3, %c0_4] : memref<1x128x128xbf16, #tpu.memory_space<vmem>>, vector<1x128x128xbf16>
    %3 = vector.shape_cast %2 : vector<1x128x128xbf16> to vector<128x128xbf16>
    %cst = arith.constant dense<0.000000e+00> : vector<512x128xf32>
    %4 = tpu.matmul %1, %3, %cst {dimension_numbers = #tpu.dot_dimension_numbers<[1], [0], [0], [1], [0, 0, 1, 1], [], []>} : vector<512x128xbf16>, vector<128x128xbf16>, vector<512x128xf32> -> vector<512x128xf32>
    %c0_5 = arith.constant 0 : index
    %c0_6 = arith.constant 0 : index
    %5 = vector.load %arg5[%c0_5, %c0_6] : memref<1x128xf32, #tpu.memory_space<vmem>>, vector<1x128xf32>
    %6 = vector.broadcast %5 : vector<1x128xf32> to vector<512x128xf32>
    %7 = arith.addf %4, %6 : vector<512x128xf32>
    %c0_7 = arith.constant 0 : index
    %c0_8 = arith.constant 0 : index
    %c0_9 = arith.constant 0 : index
    %8 = vector.load %arg6[%c0_7, %c0_8, %c0_9] : memref<1x512x128xf32, #tpu.memory_space<vmem>>, vector<1x512x128xf32>
    %9 = vector.shape_cast %8 : vector<1x512x128xf32> to vector<512x128xf32>
    %10 = vector.shape_cast %7 : vector<512x128xf32> to vector<1x512x128xf32>
    tpu.vector_store %arg6[%c0_7, %c0_8, %c0_9], %10 {strides = array<i32>} : memref<1x512x128xf32, #tpu.memory_space<vmem>>, vector<1x512x128xf32>,
    return
  }
  func.func @transform_0(%arg0: i32, %arg1: i32, %arg2: i32) -> (i32, i32, i32) {
    %c0_i32 = arith.constant 0 : i32
    %c0_i32_0 = arith.constant 0 : i32
    return %arg0, %arg1, %c0_i32 : i32, i32, i32
  }
  func.func @transform_1(%arg0: i32, %arg1: i32, %arg2: i32) -> (i32, i32, i32) {
    %c0_i32 = arith.constant 0 : i32
    %c0_i32_0 = arith.constant 0 : i32
    %c0_i32_1 = arith.constant 0 : i32
    return %arg2, %c0_i32, %c0_i32_0 : i32, i32, i32
  }
  func.func @transform_2(%arg0: i32, %arg1: i32, %arg2: i32) -> (i32, i32) {
    %c0_i32 = arith.constant 0 : i32
    %c0_i32_0 = arith.constant 0 : i32
    %c0_i32_1 = arith.constant 0 : i32
    return %c0_i32, %c0_i32_0 : i32, i32
  }
  func.func @transform_3(%arg0: i32, %arg1: i32, %arg2: i32) -> (i32, i32, i32) {
    %c4_i32 = arith.constant 4 : i32
    %0 = arith.muli %arg0, %c4_i32 : i32
    %1 = arith.addi %0, %arg2 : i32
    %c0_i32 = arith.constant 0 : i32
    %c0_i32_0 = arith.constant 0 : i32
    return %1, %arg1, %c0_i32 : i32, i32, i32
  }
}

</mosaic_0001>

<llo_original>
// kernel: tpu_custom_call.1
$region0: #{tpu_custom_call.1}
  #allocation0 [shape = 'u32[]', space=smem, size = 0x4, offset = 0x4, fixed_abs, tag = 'smem constant byte address 0x4 - core index']
  #allocation1 [shape = 'u32[144,128]{1,0:T(1,128)}', space=vmem, size = 0x12000, scoped, tag = 'internal scratch']
  %s0 = inlined_call_operand.hbm [shape: bf16[2,1024,128], index: 0, kind: input, shape index: {}]
  %s1 = inlined_call_operand.hbm [shape: bf16[4,128,128], index: 1, kind: input, shape index: {}]
  %s2 = inlined_call_operand.hbm [shape: f32[1,128], index: 2, kind: input, shape index: {}]
  %s3 = inlined_call_operand.hbm [shape: f32[8,1024,128], index: 3, kind: output, shape index: {}]
  %s4 = sld [smem:[#allocation0]]
  $region57: #{tpu_custom_call.1} parent=0
    _
  %s6 = ssub.s32 1, %s4
  %s7 = scalar_select 0, %s6, %s4
  $region1: #{tpu_custom_call.1} parent=0
    #allocation2 [shape = 'u8[262144]{0}', space=vmem, size = 0x40000, scoped, tag = 'input window, operand 0']
    #allocation3 [shape = 's32[2]{0}', space=sflag, size = 0x8, scoped, tag = 'scoped memory for tpu_custom_call.1']
    #allocation4 [shape = 's32[2]{0}', space=sflag, size = 0x8, scoped, tag = 'scoped memory for tpu_custom_call.1']
    #allocation5 [shape = 'u8[65536]{0}', space=vmem, size = 0x10000, scoped, tag = 'input window, operand 1']
    #allocation6 [shape = 's32[2]{0}', space=sflag, size = 0x8, scoped, tag = 'scoped memory for tpu_custom_call.1']
    #allocation7 [shape = 'u8[512]{0}', space=vmem, size = 0x400, scoped, tag = 'input window, operand 2, single buffered']
    #allocation8 [shape = 'u8[524288]{0}', space=vmem, size = 0x80000, scoped, tag = 'output window, operand 0']
    %8 = vsyncpa [#allocation3], 0
    %s9 = scalar_lea.sflag [#allocation3], 1
    %10 = vsyncpa %s9, 0
    %11 = vsyncpa [#allocation6], 0
    %s12 = scalar_lea.sflag [#allocation6], 1
    %13 = vsyncpa %s12, 0
    %14 = vsyncpa [#allocation4], 0
    %s15 = scalar_lea.sflag [#allocation4], 1
    %16 = vsyncpa %s15, 0
    loop: start=0, step=1, limit=18
    $region2: #{tpu_custom_call.1} parent=1 // loop_pre_header
      _
    $region3: #{tpu_custom_call.1} parent=1 // loop_header
      %s18 = sphi 0, %s22
      %p19 = scmp.ge.s32.totalorder %s18, 18
      %s25 = sphi 0, %s44
      %s26 = sphi 0, %s40
      %s27 = sphi 0, %s36
      %s28 = sphi 0, %s25
      %s29 = sphi 0, %s26
      %s30 = sphi 0, %s27
      %s31 = sphi 0, %s28
      %s32 = sphi 0, %s29
      %s33 = sphi 0, %s30
      %s49 = sphi 0, %s51
      %s52 = sphi 0, %s49
      %s53 = sphi 0, %s52
      %s69 = sphi 0, %s53
      %s75 = sphi 0, %s77
      %s78 = sphi 0, %s75
      %s79 = sphi 0, %s78
      %s95 = sphi 0, %s79
      %s99 = sphi 0, %s99
      %s101 = sphi 0, %s99
      %s102 = sphi 0, %s101
      %s116 = sphi 0, %s102
      %s128 = sphi 0, %s130
      %s131 = sphi 0, %s128
      %s132 = sphi 0, %s131
      %s148 = sphi 0, %s132
    $region4: #{tpu_custom_call.1} parent=1 // loop_header_branch
      %21 = sbr.rel (%p19) target = $region8
    $region5: #{tpu_custom_call.1} parent=1 // loop_body
      %s23 = ssub.s32 %s18, 1
      %s24 = ssub.s32 %s18, 2
      %s34 = sadd.s32 1, %s27
      %p35 = scmp.ge.s32.totalorder %s34, 4
      %s36 = scalar_select %p35, 0, %s34
      %s37 = sadd.s32 1, %s26
      %s38 = scalar_select %p35, %s37, %s26
      %p39 = scmp.ge.s32.totalorder %s38, 2
      %s40 = scalar_select %p39, 0, %s38
      %s41 = sadd.s32 1, %s25
      %s42 = scalar_select %p39, %s41, %s25
      %p43 = scmp.ge.s32.totalorder %s42, 2
      %s44 = scalar_select %p43, 0, %s42
      %s45 = ssub.s32 %s25, %s44
      %s46 = ssub.s32 %s26, %s40
      %s47 = sor.u32 %s45, %s46
      %p48 = scmp.eq.s32.totalorder %s47, 0
      %s50 = sadd.s32 %s49, 1
      %s51 = scalar_select %p48, %s49, %s50
      %p54 = pneg %p48
      %p55 = scmp.eq.s32.totalorder %s18, 15
      %p56 = por %p54, %p55
      %p57 = scmp.ne.s32.totalorder %s49, %s52
      %p58 = scmp.eq.s32.totalorder %s18, 0
      %p59 = por %p57, %p58
      %p60 = scmp.ne.s32.totalorder %s49, %s52
      %p61 = scmp.eq.s32.totalorder %s23, 15
      %p62 = por %p60, %p61
      %p63 = scmp.ne.s32.totalorder %s52, %s53
      %p64 = scmp.eq.s32.totalorder %s23, 0
      %p65 = por %p63, %p64
      %p66 = scmp.ne.s32.totalorder %s52, %s53
      %p67 = scmp.eq.s32.totalorder %s24, 15
      %p68 = por %p66, %p67
      %p70 = scmp.ne.s32.totalorder %s53, %s69
      %p71 = scmp.eq.s32.totalorder %s24, 0
      %p72 = por %p70, %p71
      %s73 = ssub.s32 %s27, %s36
      %p74 = scmp.eq.s32.totalorder %s73, 0
      %s76 = sadd.s32 %s75, 1
      %s77 = scalar_select %p74, %s75, %s76
      %p80 = pneg %p74
      %p81 = scmp.eq.s32.totalorder %s18, 15
      %p82 = por %p80, %p81
      %p83 = scmp.ne.s32.totalorder %s75, %s78
      %p84 = scmp.eq.s32.totalorder %s18, 0
      %p85 = por %p83, %p84
      %p86 = scmp.ne.s32.totalorder %s75, %s78
      %p87 = scmp.eq.s32.totalorder %s23, 15
      %p88 = por %p86, %p87
      %p89 = scmp.ne.s32.totalorder %s78, %s79
      %p90 = scmp.eq.s32.totalorder %s23, 0
      %p91 = por %p89, %p90
      %p92 = scmp.ne.s32.totalorder %s78, %s79
      %p93 = scmp.eq.s32.totalorder %s24, 15
      %p94 = por %p92, %p93
      %p96 = scmp.ne.s32.totalorder %s79, %s95
      %p97 = scmp.eq.s32.totalorder %s24, 0
      %p98 = por %p96, %p97
      %s100 = sadd.s32 %s99, 1
      %p103 = scmp.eq.s32.totalorder %s18, 15
      %p104 = scmp.ne.s32.totalorder %s99, %s101
      %p105 = scmp.eq.s32.totalorder %s18, 0
      %p106 = por %p104, %p105
      %p107 = scmp.ne.s32.totalorder %s99, %s101
      %p108 = scmp.eq.s32.totalorder %s23, 15
      %p109 = por %p107, %p108
      %p110 = scmp.ne.s32.totalorder %s101, %s102
      %p111 = scmp.eq.s32.totalorder %s23, 0
      %p112 = por %p110, %p111
      %p113 = scmp.ne.s32.totalorder %s101, %s102
      %p114 = scmp.eq.s32.totalorder %s24, 15
      %p115 = por %p113, %p114
      %p117 = scmp.ne.s32.totalorder %s102, %s116
      %p118 = scmp.eq.s32.totalorder %s24, 0
      %p119 = por %p117, %p118
      %s120 = smul.u32 %s25, 4
      %s121 = sadd.s32 %s120, %s27
      %s122 = smul.u32 %s44, 4
      %s123 = sadd.s32 %s122, %s36
      %s124 = ssub.s32 %s121, %s123
      %s125 = ssub.s32 %s26, %s40
      %s126 = sor.u32 %s124, %s125
      %p127 = scmp.eq.s32.totalorder %s126, 0
      %s129 = sadd.s32 %s128, 1
      %s130 = scalar_select %p127, %s128, %s129
      %p133 = pneg %p127
      %p134 = scmp.eq.s32.totalorder %s18, 15
      %p135 = por %p133, %p134
      %p136 = scmp.ne.s32.totalorder %s128, %s131
      %p137 = scmp.eq.s32.totalorder %s18, 0
      %p138 = por %p136, %p137
      %p139 = scmp.ne.s32.totalorder %s128, %s131
      %p140 = scmp.eq.s32.totalorder %s23, 15
      %p141 = por %p139, %p140
      %p142 = scmp.ne.s32.totalorder %s131, %s132
      %p143 = scmp.eq.s32.totalorder %s23, 0
      %p144 = por %p142, %p143
      %p145 = scmp.ne.s32.totalorder %s131, %s132
      %p146 = scmp.eq.s32.totalorder %s24, 15
      %p147 = por %p145, %p146
      %p149 = scmp.ne.s32.totalorder %s132, %s148
      %p150 = scmp.eq.s32.totalorder %s24, 0
      %p151 = por %p149, %p150
      %p152 = scmp.le.s32.totalorder 1, %s18
      %p153 = scmp.lt.s32.totalorder %s18, 17
      %p154 = pnand %p152, %p153
      %p155 = pneg %p154
      // Predicated region
      $region9: #{tpu_custom_call.1} parent=5 // pred_check
        _
      $region10: #{tpu_custom_call.1} parent=5 // pred_check_branch
        %157 = sbr.rel (%p154) target = $region12
      $region11: #{tpu_custom_call.1} parent=5 // pred_region
        %s158 = ssub.s32 %s18, 1
        // Predicated region
        $region13: #{tpu_custom_call.1} parent=11 // pred_check
          %p159 = pneg %p112
        $region14: #{tpu_custom_call.1} parent=11 // pred_check_branch
          %161 = sbr.rel (%p159) target = $region16
        $region15: #{tpu_custom_call.1} parent=11 // pred_region
          %s163 = ssub.s32 16, 16
          %164 = vsyncadd [#allocation6], %s163
          %s166 = sshll.u32 [#allocation7], 4
          %s167 = int_to_ptr.vmem [resolvable:$true] %s166
          %169 = dma.hbm_to_vmem [thread:$0]  %s2, 16, %s167, [#allocation6]
        $region16: #{tpu_custom_call.1} parent=11 // pred_fallthru
          _
      $region12: #{tpu_custom_call.1} parent=5 // pred_fallthru
        _
      %p170 = scmp.lt.s32.totalorder %s18, 16
      // Predicated region
      $region17: #{tpu_custom_call.1} parent=5 // pred_check
        %p171 = pneg %p170
      $region18: #{tpu_custom_call.1} parent=5 // pred_check_branch
        %173 = sbr.rel (%p171) target = $region20
      $region19: #{tpu_custom_call.1} parent=5 // pred_region
        // Predicated region
        $region21: #{tpu_custom_call.1} parent=19 // pred_check
          %p174 = pneg %p59
        $region22: #{tpu_custom_call.1} parent=19 // pred_check_branch
          %176 = sbr.rel (%p174) target = $region24
        $region23: #{tpu_custom_call.1} parent=19 // pred_region
          %s177 = sand.u32 %s49, 1
          %s178 = scalar_lea.sflag [#allocation3], %s177
          %s179 = sand.u32 %s49, 1
          %s180 = smul.addr %s179, 256
          %s181 = scalar_lea.vmem [#allocation2], %s180
          %s182 = smul.u32 64, %s26
          %s184 = ssub.s32 4096, 4096
          %185 = vsyncadd %s178, %s184
          %s186 = smul.addr %s25, 128
          %s187 = sadd.s32 %s182, %s186
          %s188 = smul.addr %s187, 64
          %s189 = scalar_lea.hbm %s0, %s188
          %s190 = sshll.u32 %s181, 4
          %s191 = int_to_ptr.vmem [resolvable:$true] %s190
          %196 = dma.hbm_to_vmem [thread:$0]  %s189, 4096, %s191, %s178, 64, 64, 4
        $region24: #{tpu_custom_call.1} parent=19 // pred_fallthru
          _
        // Predicated region
        $region25: #{tpu_custom_call.1} parent=19 // pred_check
          %p197 = pneg %p85
        $region26: #{tpu_custom_call.1} parent=19 // pred_check_branch
          %199 = sbr.rel (%p197) target = $region28
        $region27: #{tpu_custom_call.1} parent=19 // pred_region
          %s200 = sand.u32 %s18, 1
          %s201 = scalar_lea.sflag [#allocation6], %s200
          %s202 = sand.u32 %s75, 1
          %s203 = smul.addr %s202, 64
          %s204 = scalar_lea.vmem [#allocation5], %s203
          %s206 = ssub.s32 1024, 1024
          %207 = vsyncadd %s201, %s206
          %s208 = smul.addr %s27, 16
          %s209 = smul.addr %s208, 64
          %s210 = scalar_lea.hbm %s1, %s209
          %s211 = sshll.u32 %s204, 4
          %s212 = int_to_ptr.vmem [resolvable:$true] %s211
          %217 = dma.hbm_to_vmem [thread:$0]  %s210, 1024, %s212, %s201, 64, 64, 4
        $region28: #{tpu_custom_call.1} parent=19 // pred_fallthru
          _
      $region20: #{tpu_custom_call.1} parent=5 // pred_fallthru
        _
      %p218 = scmp.le.s32.totalorder 1, %s18
      %p219 = scmp.lt.s32.totalorder %s18, 17
      %p220 = pnand %p218, %p219
      %p221 = pneg %p220
      // Predicated region
      $region29: #{tpu_custom_call.1} parent=5 // pred_check
        _
      $region30: #{tpu_custom_call.1} parent=5 // pred_check_branch
        %223 = sbr.rel (%p220) target = $region32
      $region31: #{tpu_custom_call.1} parent=5 // pred_region
        %s224 = ssub.s32 %s18, 1
        %s225 = sand.u32 %s52, 1
        %s226 = scalar_lea.sflag [#allocation3], %s225
        %s227 = sand.u32 %s52, 1
        %s228 = smul.addr %s227, 256
        %s229 = scalar_lea.vmem [#allocation2], %s228
        // Predicated region
        $region33: #{tpu_custom_call.1} parent=31 // pred_check
          %p230 = pneg %p65
        $region34: #{tpu_custom_call.1} parent=31 // pred_check_branch
          %232 = sbr.rel (%p230) target = $region36
        $region35: #{tpu_custom_call.1} parent=31 // pred_region
          %233 = dma.done %s226, 4096
        $region36: #{tpu_custom_call.1} parent=31 // pred_fallthru
          _
        %s234 = sand.u32 %s23, 1
        %s235 = scalar_lea.sflag [#allocation6], %s234
        %s236 = sand.u32 %s78, 1
        %s237 = smul.addr %s236, 64
        %s238 = scalar_lea.vmem [#allocation5], %s237
        // Predicated region
        $region37: #{tpu_custom_call.1} parent=31 // pred_check
          %p239 = pneg %p91
        $region38: #{tpu_custom_call.1} parent=31 // pred_check_branch
          %241 = sbr.rel (%p239) target = $region40
        $region39: #{tpu_custom_call.1} parent=31 // pred_region
          %242 = dma.done %s235, 1024
        $region40: #{tpu_custom_call.1} parent=31 // pred_fallthru
          _
        // Predicated region
        $region41: #{tpu_custom_call.1} parent=31 // pred_check
          %p243 = pneg %p112
        $region42: #{tpu_custom_call.1} parent=31 // pred_check_branch
          %245 = sbr.rel (%p243) target = $region44
        $region43: #{tpu_custom_call.1} parent=31 // pred_region
          %246 = dma.done [#allocation6], 16
        $region44: #{tpu_custom_call.1} parent=31 // pred_fallthru
          _
        %s247 = sand.u32 %s52, 1
        %s248 = scalar_lea.sflag [#allocation3], %s247
        %s249 = sand.u32 %s52, 1
        %s250 = smul.addr %s249, 256
        %s251 = scalar_lea.vmem [#allocation2], %s250
        %p252 = pneg %p65
        %p253 = pneg %p62
        %s254 = sand.u32 %s23, 1
        %s255 = scalar_lea.sflag [#allocation6], %s254
        %s256 = sand.u32 %s78, 1
        %s257 = smul.addr %s256, 64
        %s258 = scalar_lea.vmem [#allocation5], %s257
        %p259 = pneg %p91
        %p260 = pneg %p88
        %p261 = pneg %p112
        %p262 = pneg %p109
        %p263 = pneg %p144
        %p264 = pneg %p141
        %s265 = sand.u32 %s131, 1
        %s266 = scalar_lea.sflag [#allocation4], %s265
        %s267 = sand.u32 %s131, 1
        %s268 = smul.addr %s267, 512
        %s269 = scalar_lea.vmem [#allocation8], %s268
        %s270 = smul.u32 64, %s29
        %s271 = smul.u32 %s28, 4
        %s272 = sadd.s32 %s271, %s30
        %s273 = smul.u32 64, %s29
        %v275 = vld [vmem:[%s229] sm:$0xf]
        %v276 = vld [vmem:[%s229 + $0x4] sm:$0xf]
        %v277 = vld [vmem:[%s229 + $0x8] sm:$0xf]
        %v278 = vld [vmem:[%s229 + $0xc] sm:$0xf]
        %v279 = vld [vmem:[%s229 + $0x10] sm:$0xf]
        %v280 = vld [vmem:[%s229 + $0x14] sm:$0xf]
        %v281 = vld [vmem:[%s229 + $0x18] sm:$0xf]
        %v282 = vld [vmem:[%s229 + $0x1c] sm:$0xf]
        %v283 = vld [vmem:[%s229 + $0x20] sm:$0xf]
        %v284 = vld [vmem:[%s229 + $0x24] sm:$0xf]
        %v285 = vld [vmem:[%s229 + $0x28] sm:$0xf]
        %v286 = vld [vmem:[%s229 + $0x2c] sm:$0xf]
        %v287 = vld [vmem:[%s229 + $0x30] sm:$0xf]
        %v288 = vld [vmem:[%s229 + $0x34] sm:$0xf]
        %v289 = vld [vmem:[%s229 + $0x38] sm:$0xf]
        %v290 = vld [vmem:[%s229 + $0x3c] sm:$0xf]
        %v291 = vld [vmem:[%s229 + $0x40] sm:$0xf]
        %v292 = vld [vmem:[%s229 + $0x44] sm:$0xf]
        %v293 = vld [vmem:[%s229 + $0x48] sm:$0xf]
        %v294 = vld [vmem:[%s229 + $0x4c] sm:$0xf]
        %v295 = vld [vmem:[%s229 + $0x50] sm:$0xf]
        %v296 = vld [vmem:[%s229 + $0x54] sm:$0xf]
        %v297 = vld [vmem:[%s229 + $0x58] sm:$0xf]
        %v298 = vld [vmem:[%s229 + $0x5c] sm:$0xf]
        %v299 = vld [vmem:[%s229 + $0x60] sm:$0xf]
        %v300 = vld [vmem:[%s229 + $0x64] sm:$0xf]
        %v301 = vld [vmem:[%s229 + $0x68] sm:$0xf]
        %v302 = vld [vmem:[%s229 + $0x6c] sm:$0xf]
        %v303 = vld [vmem:[%s229 + $0x70] sm:$0xf]
        %v304 = vld [vmem:[%s229 + $0x74] sm:$0xf]
        %v305 = vld [vmem:[%s229 + $0x78] sm:$0xf]
        %v306 = vld [vmem:[%s229 + $0x7c] sm:$0xf]
        %v307 = vld [vmem:[%s229 + $0x80] sm:$0xf]
        %v308 = vld [vmem:[%s229 + $0x84] sm:$0xf]
        %v309 = vld [vmem:[%s229 + $0x88] sm:$0xf]
        %v310 = vld [vmem:[%s229 + $0x8c] sm:$0xf]
        %v311 = vld [vmem:[%s229 + $0x90] sm:$0xf]
        %v312 = vld [vmem:[%s229 + $0x94] sm:$0xf]
        %v313 = vld [vmem:[%s229 + $0x98] sm:$0xf]
        %v314 = vld [vmem:[%s229 + $0x9c] sm:$0xf]
        %v315 = vld [vmem:[%s229 + $0xa0] sm:$0xf]
        %v316 = vld [vmem:[%s229 + $0xa4] sm:$0xf]
        %v317 = vld [vmem:[%s229 + $0xa8] sm:$0xf]
        %v318 = vld [vmem:[%s229 + $0xac] sm:$0xf]
        %v319 = vld [vmem:[%s229 + $0xb0] sm:$0xf]
        %v320 = vld [vmem:[%s229 + $0xb4] sm:$0xf]
        %v321 = vld [vmem:[%s229 + $0xb8] sm:$0xf]
        %v322 = vld [vmem:[%s229 + $0xbc] sm:$0xf]
        %v323 = vld [vmem:[%s229 + $0xc0] sm:$0xf]
        %v324 = vld [vmem:[%s229 + $0xc4] sm:$0xf]
        %v325 = vld [vmem:[%s229 + $0xc8] sm:$0xf]
        %v326 = vld [vmem:[%s229 + $0xcc] sm:$0xf]
        %v327 = vld [vmem:[%s229 + $0xd0] sm:$0xf]
        %v328 = vld [vmem:[%s229 + $0xd4] sm:$0xf]
        %v329 = vld [vmem:[%s229 + $0xd8] sm:$0xf]
        %v330 = vld [vmem:[%s229 + $0xdc] sm:$0xf]
        %v331 = vld [vmem:[%s229 + $0xe0] sm:$0xf]
        %v332 = vld [vmem:[%s229 + $0xe4] sm:$0xf]
        %v333 = vld [vmem:[%s229 + $0xe8] sm:$0xf]
        %v334 = vld [vmem:[%s229 + $0xec] sm:$0xf]
        %v335 = vld [vmem:[%s229 + $0xf0] sm:$0xf]
        %v336 = vld [vmem:[%s229 + $0xf4] sm:$0xf]
        %v337 = vld [vmem:[%s229 + $0xf8] sm:$0xf]
        %v338 = vld [vmem:[%s229 + $0xfc] sm:$0xf]
        %v339 = vld [vmem:[%s238] sm:$0xf]
        %v340 = vld [vmem:[%s238 + $0x4] sm:$0xf]
        %v341 = vld [vmem:[%s238 + $0x8] sm:$0xf]
        %v342 = vld [vmem:[%s238 + $0xc] sm:$0xf]
        %v343 = vld [vmem:[%s238 + $0x10] sm:$0xf]
        %v344 = vld [vmem:[%s238 + $0x14] sm:$0xf]
        %v345 = vld [vmem:[%s238 + $0x18] sm:$0xf]
        %v346 = vld [vmem:[%s238 + $0x1c] sm:$0xf]
        %v347 = vld [vmem:[%s238 + $0x20] sm:$0xf]
        %v348 = vld [vmem:[%s238 + $0x24] sm:$0xf]
        %v349 = vld [vmem:[%s238 + $0x28] sm:$0xf]
        %v350 = vld [vmem:[%s238 + $0x2c] sm:$0xf]
        %v351 = vld [vmem:[%s238 + $0x30] sm:$0xf]
        %v352 = vld [vmem:[%s238 + $0x34] sm:$0xf]
        %v353 = vld [vmem:[%s238 + $0x38] sm:$0xf]
        %v354 = vld [vmem:[%s238 + $0x3c] sm:$0xf]
        %v355 = vld [vmem:[#allocation7] sm:$0x1]
        %v357 = vlaneseq
        %v358 = vshrl.u32 %v357, 7
        %v359 = vsub.s32 0, %v358
        %v360 = vrot.slane %v355, %v359
        %v426 = vunpack.c.l.b16 %v275
        %v427 = vunpack.c.l.b16 %v276
        %v428 = vunpack.c.l.b16 %v277
        %v429 = vunpack.c.l.b16 %v278
        %v430 = vunpack.c.l.b16 %v279
        %v431 = vunpack.c.l.b16 %v280
        %v432 = vunpack.c.l.b16 %v281
        %v433 = vunpack.c.l.b16 %v282
        %v434 = vunpack.c.l.b16 %v283
        %v435 = vunpack.c.l.b16 %v284
        %v436 = vunpack.c.l.b16 %v285
        %v437 = vunpack.c.l.b16 %v286
        %v438 = vunpack.c.l.b16 %v287
        %v439 = vunpack.c.l.b16 %v288
        %v440 = vunpack.c.l.b16 %v289
        %v441 = vunpack.c.l.b16 %v290
        %v442 = vunpack.c.l.b16 %v291
        %v443 = vunpack.c.l.b16 %v292
        %v444 = vunpack.c.l.b16 %v293
        %v445 = vunpack.c.l.b16 %v294
        %v446 = vunpack.c.l.b16 %v295
        %v447 = vunpack.c.l.b16 %v296
        %v448 = vunpack.c.l.b16 %v297
        %v449 = vunpack.c.l.b16 %v298
        %v450 = vunpack.c.l.b16 %v299
        %v451 = vunpack.c.l.b16 %v300
        %v452 = vunpack.c.l.b16 %v301
        %v453 = vunpack.c.l.b16 %v302
        %v454 = vunpack.c.l.b16 %v303
        %v455 = vunpack.c.l.b16 %v304
        %v456 = vunpack.c.l.b16 %v305
        %v457 = vunpack.c.l.b16 %v306
        %v458 = vunpack.c.l.b16 %v307
        %v459 = vunpack.c.l.b16 %v308
        %v460 = vunpack.c.l.b16 %v309
        %v461 = vunpack.c.l.b16 %v310
        %v462 = vunpack.c.l.b16 %v311
        %v463 = vunpack.c.l.b16 %v312
        %v464 = vunpack.c.l.b16 %v313
        %v465 = vunpack.c.l.b16 %v314
        %v466 = vunpack.c.l.b16 %v315
        %v467 = vunpack.c.l.b16 %v316
        %v468 = vunpack.c.l.b16 %v317
        %v469 = vunpack.c.l.b16 %v318
        %v470 = vunpack.c.l.b16 %v319
        %v471 = vunpack.c.l.b16 %v320
        %v472 = vunpack.c.l.b16 %v321
        %v473 = vunpack.c.l.b16 %v322
        %v474 = vunpack.c.l.b16 %v323
        %v475 = vunpack.c.l.b16 %v324
        %v476 = vunpack.c.l.b16 %v325
        %v477 = vunpack.c.l.b16 %v326
        %v478 = vunpack.c.l.b16 %v327
        %v479 = vunpack.c.l.b16 %v328
        %v480 = vunpack.c.l.b16 %v329
        %v481 = vunpack.c.l.b16 %v330
        %v482 = vunpack.c.l.b16 %v331
        %v483 = vunpack.c.l.b16 %v332
        %v484 = vunpack.c.l.b16 %v333
        %v485 = vunpack.c.l.b16 %v334
        %v486 = vunpack.c.l.b16 %v335
        %v487 = vunpack.c.l.b16 %v336
        %v488 = vunpack.c.l.b16 %v337
        %v489 = vunpack.c.l.b16 %v338
        %v490 = vpack.c.b16 %v427, %v426
        %v491 = vpack.c.b16 %v429, %v428
        %v492 = vpack.c.b16 %v431, %v430
        %v493 = vpack.c.b16 %v433, %v432
        %v494 = vpack.c.b16 %v435, %v434
        %v495 = vpack.c.b16 %v437, %v436
        %v496 = vpack.c.b16 %v439, %v438
        %v497 = vpack.c.b16 %v441, %v440
        %v498 = vpack.c.b16 %v443, %v442
        %v499 = vpack.c.b16 %v445, %v444
        %v500 = vpack.c.b16 %v447, %v446
        %v501 = vpack.c.b16 %v449, %v448
        %v502 = vpack.c.b16 %v451, %v450
        %v503 = vpack.c.b16 %v453, %v452
        %v504 = vpack.c.b16 %v455, %v454
        %v505 = vpack.c.b16 %v457, %v456
        %v506 = vpack.c.b16 %v459, %v458
        %v507 = vpack.c.b16 %v461, %v460
        %v508 = vpack.c.b16 %v463, %v462
        %v509 = vpack.c.b16 %v465, %v464
        %v510 = vpack.c.b16 %v467, %v466
        %v511 = vpack.c.b16 %v469, %v468
        %v512 = vpack.c.b16 %v471, %v470
        %v513 = vpack.c.b16 %v473, %v472
        %v514 = vpack.c.b16 %v475, %v474
        %v515 = vpack.c.b16 %v477, %v476
        %v516 = vpack.c.b16 %v479, %v478
        %v517 = vpack.c.b16 %v481, %v480
        %v518 = vpack.c.b16 %v483, %v482
        %v519 = vpack.c.b16 %v485, %v484
        %v520 = vpack.c.b16 %v487, %v486
        %v521 = vpack.c.b16 %v489, %v488
        %v570 = vunpack.c.l.b16 %v339
        %v571 = vunpack.c.l.b16 %v340
        %v572 = vunpack.c.l.b16 %v341
        %v573 = vunpack.c.l.b16 %v342
        %v574 = vunpack.c.l.b16 %v343
        %v575 = vunpack.c.l.b16 %v344
        %v576 = vunpack.c.l.b16 %v345
        %v577 = vunpack.c.l.b16 %v346
        %v578 = vunpack.c.l.b16 %v347
        %v579 = vunpack.c.l.b16 %v348
        %v580 = vunpack.c.l.b16 %v349
        %v581 = vunpack.c.l.b16 %v350
        %v582 = vunpack.c.l.b16 %v351
        %v583 = vunpack.c.l.b16 %v352
        %v584 = vunpack.c.l.b16 %v353
        %v585 = vunpack.c.l.b16 %v354
        %v586 = vpack.c.b16 %v571, %v570
        %v587 = vpack.c.b16 %v573, %v572
        %v588 = vpack.c.b16 %v575, %v574
        %v589 = vpack.c.b16 %v577, %v576
        %v590 = vpack.c.b16 %v579, %v578
        %v591 = vpack.c.b16 %v581, %v580
        %v592 = vpack.c.b16 %v583, %v582
        %v593 = vpack.c.b16 %v585, %v584
        %602 = vmatprep.subr.bf16.mxu0 0
        %603 = vmatpush1.bf16.msra.mxu0 %v586
        %604 = vmatprep.subr.bf16.mxu0 0
        %605 = vmatpush1.bf16.msra.mxu0 %v587
        %606 = vmatprep.subr.bf16.mxu0 0
        %607 = vmatpush1.bf16.msra.mxu0 %v588
        %608 = vmatprep.subr.bf16.mxu0 0
        %609 = vmatpush1.bf16.msra.mxu0 %v589
        %610 = vmatprep.subr.bf16.mxu0 0
        %611 = vmatpush1.bf16.msra.mxu0 %v590
        %612 = vmatprep.subr.bf16.mxu0 0
        %613 = vmatpush1.bf16.msra.mxu0 %v591
        %614 = vmatprep.subr.bf16.mxu0 0
        %615 = vmatpush1.bf16.msra.mxu0 %v592
        %616 = vmatprep.subr.bf16.mxu0 0
        %617 = vmatpush1.bf16.msra.mxu0 %v593
        %618 = vmatprep.subr.bf16.mxu0 0
        %619 = vmatpush1.bf16.msra.mxu0 0
        %620 = vmatprep.subr.bf16.mxu0 0
        %621 = vmatpush1.bf16.msra.mxu0 0
        %622 = vmatprep.subr.bf16.mxu0 0
        %623 = vmatpush1.bf16.msra.mxu0 0
        %624 = vmatprep.subr.bf16.mxu0 0
        %625 = vmatpush1.bf16.msra.mxu0 0
        %626 = vmatprep.subr.bf16.mxu0 0
        %627 = vmatpush1.bf16.msra.mxu0 0
        %628 = vmatprep.subr.bf16.mxu0 0
        %629 = vmatpush1.bf16.msra.mxu0 0
        %630 = vmatprep.subr.bf16.mxu0 0
        %631 = vmatpush1.bf16.msra.mxu0 0
        %632 = vmatprep.subr.bf16.mxu0 0
        %633 = vmatpush1.bf16.msra.mxu0 0
        %634 = vmatprep.mubr.bf16.mxu0 0
        %635 = vmatmul.mubr.bf16.gmra.mrb[0].mxu0 %v490
        %v636 = vpop.f32.mrb[0].mxu0
        %v637 = vadd.f32 %v360, %v636
        %v638 = vpop.f32.mrb[0].mxu0
        %v639 = vpop.f32.mrb[0].mxu0
        %v640 = vadd.f32 %v360, %v639
        %v641 = vpop.f32.mrb[0].mxu0
        %642 = vmatprep.mubr.bf16.mxu0 0
        %643 = vmatmul.mubr.bf16.gmra.mrb[0].mxu0 %v491
        %v644 = vpop.f32.mrb[0].mxu0
        %v645 = vadd.f32 %v360, %v644
        %v646 = vpop.f32.mrb[0].mxu0
        %v647 = vpop.f32.mrb[0].mxu0
        %v648 = vadd.f32 %v360, %v647
        %v649 = vpop.f32.mrb[0].mxu0
        %650 = vmatprep.mubr.bf16.mxu0 0
        %651 = vmatmul.mubr.bf16.gmra.mrb[0].mxu0 %v492
        %v652 = vpop.f32.mrb[0].mxu0
        %v653 = vadd.f32 %v360, %v652
        %v654 = vpop.f32.mrb[0].mxu0
        %v655 = vpop.f32.mrb[0].mxu0
        %v656 = vadd.f32 %v360, %v655
        %v657 = vpop.f32.mrb[0].mxu0
        %658 = vmatprep.mubr.bf16.mxu0 0
        %659 = vmatmul.mubr.bf16.gmra.mrb[0].mxu0 %v493
        %v660 = vpop.f32.mrb[0].mxu0
        %v661 = vadd.f32 %v360, %v660
        %v662 = vpop.f32.mrb[0].mxu0
        %v663 = vpop.f32.mrb[0].mxu0
        %v664 = vadd.f32 %v360, %v663
        %v665 = vpop.f32.mrb[0].mxu0
        %666 = vmatprep.mubr.bf16.mxu0 0
        %667 = vmatmul.mubr.bf16.gmra.mrb[0].mxu0 %v494
        %v668 = vpop.f32.mrb[0].mxu0
        %v669 = vadd.f32 %v360, %v668
        %v670 = vpop.f32.mrb[0].mxu0
        %v671 = vpop.f32.mrb[0].mxu0
        %v672 = vadd.f32 %v360, %v671
        %v673 = vpop.f32.mrb[0].mxu0
        %674 = vmatprep.mubr.bf16.mxu0 0
        %675 = vmatmul.mubr.bf16.gmra.mrb[0].mxu0 %v495
        %v676 = vpop.f32.mrb[0].mxu0
        %v677 = vadd.f32 %v360, %v676
        %v678 = vpop.f32.mrb[0].mxu0
        %v679 = vpop.f32.mrb[0].mxu0
        %v680 = vadd.f32 %v360, %v679
        %v681 = vpop.f32.mrb[0].mxu0
        %682 = vmatprep.mubr.bf16.mxu0 0
        %683 = vmatmul.mubr.bf16.gmra.mrb[0].mxu0 %v496
        %v684 = vpop.f32.mrb[0].mxu0
        %v685 = vadd.f32 %v360, %v684
        %v686 = vpop.f32.mrb[0].mxu0
        %v687 = vpop.f32.mrb[0].mxu0
        %v688 = vadd.f32 %v360, %v687
        %v689 = vpop.f32.mrb[0].mxu0
        %690 = vmatprep.mubr.bf16.mxu0 0
        %691 = vmatmul.mubr.bf16.gmra.mrb[0].mxu0 %v497
        %v692 = vpop.f32.mrb[0].mxu0
        %v693 = vadd.f32 %v360, %v692
        %v694 = vpop.f32.mrb[0].mxu0
        %v695 = vpop.f32.mrb[0].mxu0
        %v696 = vadd.f32 %v360, %v695
        %v697 = vpop.f32.mrb[0].mxu0
        %698 = vmatprep.mubr.bf16.mxu0 0
        %699 = vmatmul.mubr.bf16.gmra.mrb[0].mxu0 %v498
        %v700 = vpop.f32.mrb[0].mxu0
        %v701 = vadd.f32 %v360, %v700
        %v702 = vpop.f32.mrb[0].mxu0
        %v703 = vpop.f32.mrb[0].mxu0
        %v704 = vadd.f32 %v360, %v703
        %v705 = vpop.f32.mrb[0].mxu0
        %706 = vmatprep.mubr.bf16.mxu0 0
        %707 = vmatmul.mubr.bf16.gmra.mrb[0].mxu0 %v499
        %v708 = vpop.f32.mrb[0].mxu0
        %v709 = vadd.f32 %v360, %v708
        %v710 = vpop.f32.mrb[0].mxu0
        %v711 = vpop.f32.mrb[0].mxu0
        %v712 = vadd.f32 %v360, %v711
        %v713 = vpop.f32.mrb[0].mxu0
        %714 = vmatprep.mubr.bf16.mxu0 0
        %715 = vmatmul.mubr.bf16.gmra.mrb[0].mxu0 %v500
        %v716 = vpop.f32.mrb[0].mxu0
        %v717 = vadd.f32 %v360, %v716
        %v718 = vpop.f32.mrb[0].mxu0
        %v719 = vpop.f32.mrb[0].mxu0
        %v720 = vadd.f32 %v360, %v719
        %v721 = vpop.f32.mrb[0].mxu0
        %722 = vmatprep.mubr.bf16.mxu0 0
        %723 = vmatmul.mubr.bf16.gmra.mrb[0].mxu0 %v501
        %v724 = vpop.f32.mrb[0].mxu0
        %v725 = vadd.f32 %v360, %v724
        %v726 = vpop.f32.mrb[0].mxu0
        %v727 = vpop.f32.mrb[0].mxu0
        %v728 = vadd.f32 %v360, %v727
        %v729 = vpop.f32.mrb[0].mxu0
        %730 = vmatprep.mubr.bf16.mxu0 0
        %731 = vmatmul.mubr.bf16.gmra.mrb[0].mxu0 %v502
        %v732 = vpop.f32.mrb[0].mxu0
        %v733 = vadd.f32 %v360, %v732
        %v734 = vpop.f32.mrb[0].mxu0
        %v735 = vpop.f32.mrb[0].mxu0
        %v736 = vadd.f32 %v360, %v735
        %v737 = vpop.f32.mrb[0].mxu0
        %738 = vmatprep.mubr.bf16.mxu0 0
        %739 = vmatmul.mubr.bf16.gmra.mrb[0].mxu0 %v503
        %v740 = vpop.f32.mrb[0].mxu0
        %v741 = vadd.f32 %v360, %v740
        %v742 = vpop.f32.mrb[0].mxu0
        %v743 = vpop.f32.mrb[0].mxu0
        %v744 = vadd.f32 %v360, %v743
        %v745 = vpop.f32.mrb[0].mxu0
        %746 = vmatprep.mubr.bf16.mxu0 0
        %747 = vmatmul.mubr.bf16.gmra.mrb[0].mxu0 %v504
        %v748 = vpop.f32.mrb[0].mxu0
        %v749 = vadd.f32 %v360, %v748
        %v750 = vpop.f32.mrb[0].mxu0
        %v751 = vpop.f32.mrb[0].mxu0
        %v752 = vadd.f32 %v360, %v751
        %v753 = vpop.f32.mrb[0].mxu0
        %754 = vmatprep.mubr.bf16.mxu0 0
        %755 = vmatmul.mubr.bf16.gmra.mrb[0].mxu0 %v505
        %v756 = vpop.f32.mrb[0].mxu0
        %v757 = vadd.f32 %v360, %v756
        %v758 = vpop.f32.mrb[0].mxu0
        %v759 = vpop.f32.mrb[0].mxu0
        %v760 = vadd.f32 %v360, %v759
        %v761 = vpop.f32.mrb[0].mxu0
        %762 = vmatprep.mubr.bf16.mxu0 0
        %763 = vmatmul.mubr.bf16.gmra.mrb[0].mxu0 %v506
        %v764 = vpop.f32.mrb[0].mxu0
        %v765 = vadd.f32 %v360, %v764
        %v766 = vpop.f32.mrb[0].mxu0
        %v767 = vpop.f32.mrb[0].mxu0
        %v768 = vadd.f32 %v360, %v767
        %v769 = vpop.f32.mrb[0].mxu0
        %770 = vmatprep.mubr.bf16.mxu0 0
        %771 = vmatmul.mubr.bf16.gmra.mrb[0].mxu0 %v507
        %v772 = vpop.f32.mrb[0].mxu0
        %v773 = vadd.f32 %v360, %v772
        %v774 = vpop.f32.mrb[0].mxu0
        %v775 = vpop.f32.mrb[0].mxu0
        %v776 = vadd.f32 %v360, %v775
        %v777 = vpop.f32.mrb[0].mxu0
        %778 = vmatprep.mubr.bf16.mxu0 0
        %779 = vmatmul.mubr.bf16.gmra.mrb[0].mxu0 %v508
        %v780 = vpop.f32.mrb[0].mxu0
        %v781 = vadd.f32 %v360, %v780
        %v782 = vpop.f32.mrb[0].mxu0
        %v783 = vpop.f32.mrb[0].mxu0
        %v784 = vadd.f32 %v360, %v783
        %v785 = vpop.f32.mrb[0].mxu0
        %786 = vmatprep.mubr.bf16.mxu0 0
        %787 = vmatmul.mubr.bf16.gmra.mrb[0].mxu0 %v509
        %v788 = vpop.f32.mrb[0].mxu0
        %v789 = vadd.f32 %v360, %v788
        %v790 = vpop.f32.mrb[0].mxu0
        %v791 = vpop.f32.mrb[0].mxu0
        %v792 = vadd.f32 %v360, %v791
        %v793 = vpop.f32.mrb[0].mxu0
        %794 = vmatprep.mubr.bf16.mxu0 0
        %795 = vmatmul.mubr.bf16.gmra.mrb[0].mxu0 %v510
        %v796 = vpop.f32.mrb[0].mxu0
        %v797 = vadd.f32 %v360, %v796
        %v798 = vpop.f32.mrb[0].mxu0
        %v799 = vpop.f32.mrb[0].mxu0
        %v800 = vadd.f32 %v360, %v799
        %v801 = vpop.f32.mrb[0].mxu0
        %802 = vmatprep.mubr.bf16.mxu0 0
        %803 = vmatmul.mubr.bf16.gmra.mrb[0].mxu0 %v511
        %v804 = vpop.f32.mrb[0].mxu0
        %v805 = vadd.f32 %v360, %v804
        %v806 = vpop.f32.mrb[0].mxu0
        %v807 = vpop.f32.mrb[0].mxu0
        %v808 = vadd.f32 %v360, %v807
        %v809 = vpop.f32.mrb[0].mxu0
        %810 = vmatprep.mubr.bf16.mxu0 0
        %811 = vmatmul.mubr.bf16.gmra.mrb[0].mxu0 %v512
        %v812 = vpop.f32.mrb[0].mxu0
        %v813 = vadd.f32 %v360, %v812
        %v814 = vpop.f32.mrb[0].mxu0
        %v815 = vpop.f32.mrb[0].mxu0
        %v816 = vadd.f32 %v360, %v815
        %v817 = vpop.f32.mrb[0].mxu0
        %818 = vmatprep.mubr.bf16.mxu0 0
        %819 = vmatmul.mubr.bf16.gmra.mrb[0].mxu0 %v513
        %v820 = vpop.f32.mrb[0].mxu0
        %v821 = vadd.f32 %v360, %v820
        %v822 = vpop.f32.mrb[0].mxu0
        %v823 = vpop.f32.mrb[0].mxu0
        %v824 = vadd.f32 %v360, %v823
        %v825 = vpop.f32.mrb[0].mxu0
        %826 = vmatprep.mubr.bf16.mxu0 0
        %827 = vmatmul.mubr.bf16.gmra.mrb[0].mxu0 %v514
        %v828 = vpop.f32.mrb[0].mxu0
        %v829 = vadd.f32 %v360, %v828
        %v830 = vpop.f32.mrb[0].mxu0
        %v831 = vpop.f32.mrb[0].mxu0
        %v832 = vadd.f32 %v360, %v831
        %v833 = vpop.f32.mrb[0].mxu0
        %834 = vmatprep.mubr.bf16.mxu0 0
        %835 = vmatmul.mubr.bf16.gmra.mrb[0].mxu0 %v515
        %v836 = vpop.f32.mrb[0].mxu0
        %v837 = vadd.f32 %v360, %v836
        %v838 = vpop.f32.mrb[0].mxu0
        %v839 = vpop.f32.mrb[0].mxu0
        %v840 = vadd.f32 %v360, %v839
        %v841 = vpop.f32.mrb[0].mxu0
        %842 = vmatprep.mubr.bf16.mxu0 0
        %843 = vmatmul.mubr.bf16.gmra.mrb[0].mxu0 %v516
        %v844 = vpop.f32.mrb[0].mxu0
        %v845 = vadd.f32 %v360, %v844
        %v846 = vpop.f32.mrb[0].mxu0
        %v847 = vpop.f32.mrb[0].mxu0
        %v848 = vadd.f32 %v360, %v847
        %v849 = vpop.f32.mrb[0].mxu0
        %850 = vmatprep.mubr.bf16.mxu0 0
        %851 = vmatmul.mubr.bf16.gmra.mrb[0].mxu0 %v517
        %v852 = vpop.f32.mrb[0].mxu0
        %v853 = vadd.f32 %v360, %v852
        %v854 = vpop.f32.mrb[0].mxu0
        %v855 = vpop.f32.mrb[0].mxu0
        %v856 = vadd.f32 %v360, %v855
        %v857 = vpop.f32.mrb[0].mxu0
        %858 = vmatprep.mubr.bf16.mxu0 0
        %859 = vmatmul.mubr.bf16.gmra.mrb[0].mxu0 %v518
        %v860 = vpop.f32.mrb[0].mxu0
        %v861 = vadd.f32 %v360, %v860
        %v862 = vpop.f32.mrb[0].mxu0
        %v863 = vpop.f32.mrb[0].mxu0
        %v864 = vadd.f32 %v360, %v863
        %v865 = vpop.f32.mrb[0].mxu0
        %866 = vmatprep.mubr.bf16.mxu0 0
        %867 = vmatmul.mubr.bf16.gmra.mrb[0].mxu0 %v519
        %v868 = vpop.f32.mrb[0].mxu0
        %v869 = vadd.f32 %v360, %v868
        %v870 = vpop.f32.mrb[0].mxu0
        %v871 = vpop.f32.mrb[0].mxu0
        %v872 = vadd.f32 %v360, %v871
        %v873 = vpop.f32.mrb[0].mxu0
        %874 = vmatprep.mubr.bf16.mxu0 0
        %875 = vmatmul.mubr.bf16.gmra.mrb[0].mxu0 %v520
        %v876 = vpop.f32.mrb[0].mxu0
        %v877 = vadd.f32 %v360, %v876
        %v878 = vpop.f32.mrb[0].mxu0
        %v879 = vpop.f32.mrb[0].mxu0
        %v880 = vadd.f32 %v360, %v879
        %v881 = vpop.f32.mrb[0].mxu0
        %882 = vmatprep.mubr.bf16.mxu0 0
        %883 = vmatmul.mubr.bf16.gmra.mrb[0].mxu0 %v521
        %v884 = vpop.f32.mrb[0].mxu0
        %v885 = vadd.f32 %v360, %v884
        %v886 = vpop.f32.mrb[0].mxu0
        %v887 = vpop.f32.mrb[0].mxu0
        %v888 = vadd.f32 %v360, %v887
        %v889 = vpop.f32.mrb[0].mxu0
        %890 = vdwg.mxu0
        %891 = vst [vmem:[%s269] sm:$0xff] %v637
        %892 = vst [vmem:[%s269 + $0x8] sm:$0xff] %v640
        %893 = vst [vmem:[%s269 + $0x10] sm:$0xff] %v645
        %894 = vst [vmem:[%s269 + $0x18] sm:$0xff] %v648
        %895 = vst [vmem:[%s269 + $0x20] sm:$0xff] %v653
        %896 = vst [vmem:[%s269 + $0x28] sm:$0xff] %v656
        %897 = vst [vmem:[%s269 + $0x30] sm:$0xff] %v661
        %898 = vst [vmem:[%s269 + $0x38] sm:$0xff] %v664
        %899 = vst [vmem:[%s269 + $0x40] sm:$0xff] %v669
        %900 = vst [vmem:[%s269 + $0x48] sm:$0xff] %v672
        %901 = vst [vmem:[%s269 + $0x50] sm:$0xff] %v677
        %902 = vst [vmem:[%s269 + $0x58] sm:$0xff] %v680
        %903 = vst [vmem:[%s269 + $0x60] sm:$0xff] %v685
        %904 = vst [vmem:[%s269 + $0x68] sm:$0xff] %v688
        %905 = vst [vmem:[%s269 + $0x70] sm:$0xff] %v693
        %906 = vst [vmem:[%s269 + $0x78] sm:$0xff] %v696
        %907 = vst [vmem:[%s269 + $0x80] sm:$0xff] %v701
        %908 = vst [vmem:[%s269 + $0x88] sm:$0xff] %v704
        %909 = vst [vmem:[%s269 + $0x90] sm:$0xff] %v709
        %910 = vst [vmem:[%s269 + $0x98] sm:$0xff] %v712
        %911 = vst [vmem:[%s269 + $0xa0] sm:$0xff] %v717
        %912 = vst [vmem:[%s269 + $0xa8] sm:$0xff] %v720
        %913 = vst [vmem:[%s269 + $0xb0] sm:$0xff] %v725
        %914 = vst [vmem:[%s269 + $0xb8] sm:$0xff] %v728
        %915 = vst [vmem:[%s269 + $0xc0] sm:$0xff] %v733
        %916 = vst [vmem:[%s269 + $0xc8] sm:$0xff] %v736
        %917 = vst [vmem:[%s269 + $0xd0] sm:$0xff] %v741
        %918 = vst [vmem:[%s269 + $0xd8] sm:$0xff] %v744
        %919 = vst [vmem:[%s269 + $0xe0] sm:$0xff] %v749
        %920 = vst [vmem:[%s269 + $0xe8] sm:$0xff] %v752
        %921 = vst [vmem:[%s269 + $0xf0] sm:$0xff] %v757
        %922 = vst [vmem:[%s269 + $0xf8] sm:$0xff] %v760
        %923 = vst [vmem:[%s269 + $0x100] sm:$0xff] %v765
        %924 = vst [vmem:[%s269 + $0x108] sm:$0xff] %v768
        %925 = vst [vmem:[%s269 + $0x110] sm:$0xff] %v773
        %926 = vst [vmem:[%s269 + $0x118] sm:$0xff] %v776
        %927 = vst [vmem:[%s269 + $0x120] sm:$0xff] %v781
        %928 = vst [vmem:[%s269 + $0x128] sm:$0xff] %v784
        %929 = vst [vmem:[%s269 + $0x130] sm:$0xff] %v789
        %930 = vst [vmem:[%s269 + $0x138] sm:$0xff] %v792
        %931 = vst [vmem:[%s269 + $0x140] sm:$0xff] %v797
        %932 = vst [vmem:[%s269 + $0x148] sm:$0xff] %v800
        %933 = vst [vmem:[%s269 + $0x150] sm:$0xff] %v805
        %934 = vst [vmem:[%s269 + $0x158] sm:$0xff] %v808
        %935 = vst [vmem:[%s269 + $0x160] sm:$0xff] %v813
        %936 = vst [vmem:[%s269 + $0x168] sm:$0xff] %v816
        %937 = vst [vmem:[%s269 + $0x170] sm:$0xff] %v821
        %938 = vst [vmem:[%s269 + $0x178] sm:$0xff] %v824
        %939 = vst [vmem:[%s269 + $0x180] sm:$0xff] %v829
        %940 = vst [vmem:[%s269 + $0x188] sm:$0xff] %v832
        %941 = vst [vmem:[%s269 + $0x190] sm:$0xff] %v837
        %942 = vst [vmem:[%s269 + $0x198] sm:$0xff] %v840
        %943 = vst [vmem:[%s269 + $0x1a0] sm:$0xff] %v845
        %944 = vst [vmem:[%s269 + $0x1a8] sm:$0xff] %v848
        %945 = vst [vmem:[%s269 + $0x1b0] sm:$0xff] %v853
        %946 = vst [vmem:[%s269 + $0x1b8] sm:$0xff] %v856
        %947 = vst [vmem:[%s269 + $0x1c0] sm:$0xff] %v861
        %948 = vst [vmem:[%s269 + $0x1c8] sm:$0xff] %v864
        %949 = vst [vmem:[%s269 + $0x1d0] sm:$0xff] %v869
        %950 = vst [vmem:[%s269 + $0x1d8] sm:$0xff] %v872
        %951 = vst [vmem:[%s269 + $0x1e0] sm:$0xff] %v877
        %952 = vst [vmem:[%s269 + $0x1e8] sm:$0xff] %v880
        %953 = vst [vmem:[%s269 + $0x1f0] sm:$0xff] %v885
        %954 = vst [vmem:[%s269 + $0x1f8] sm:$0xff] %v888
        %s955 = sand.u32 %s131, 1
        %s956 = scalar_lea.sflag [#allocation4], %s955
        %s957 = sand.u32 %s131, 1
        %s958 = smul.addr %s957, 512
        %s959 = scalar_lea.vmem [#allocation8], %s958
        // Predicated region
        $region45: #{tpu_custom_call.1} parent=31 // pred_check
          %p960 = pneg %p141
        $region46: #{tpu_custom_call.1} parent=31 // pred_check_branch
          %962 = sbr.rel (%p960) target = $region48
        $region47: #{tpu_custom_call.1} parent=31 // pred_region
          %s963 = smul.u32 %s28, 4
          %s964 = sadd.s32 %s963, %s30
          %s965 = smul.u32 64, %s29
          %s967 = ssub.s32 8192, 8192
          %968 = vsyncadd %s956, %s967
          %s969 = smul.addr %s964, 128
          %s970 = sadd.s32 %s965, %s969
          %s971 = smul.addr %s970, 128
          %s972 = scalar_lea.hbm %s3, %s971
          %s973 = sshll.u32 %s959, 4
          %s974 = int_to_ptr.vmem [resolvable:$true] %s973
          %979 = dma.vmem_to_hbm [thread:$0]  %s974, 8192, %s972, %s956, 128, 128, 8
        $region48: #{tpu_custom_call.1} parent=31 // pred_fallthru
          _
      $region32: #{tpu_custom_call.1} parent=5 // pred_fallthru
        _
      %p980 = scmp.le.s32.totalorder 2, %s18
      // Predicated region
      $region49: #{tpu_custom_call.1} parent=5 // pred_check
        %p981 = pneg %p980
      $region50: #{tpu_custom_call.1} parent=5 // pred_check_branch
        %983 = sbr.rel (%p981) target = $region52
      $region51: #{tpu_custom_call.1} parent=5 // pred_region
        %s984 = ssub.s32 %s18, 2
        // Predicated region
        $region53: #{tpu_custom_call.1} parent=51 // pred_check
          %p985 = pneg %p147
        $region54: #{tpu_custom_call.1} parent=51 // pred_check_branch
          %987 = sbr.rel (%p985) target = $region56
        $region55: #{tpu_custom_call.1} parent=51 // pred_region
          %s988 = sand.u32 %s132, 1
          %s989 = scalar_lea.sflag [#allocation4], %s988
          %s990 = sand.u32 %s132, 1
          %s991 = smul.addr %s990, 512
          %s992 = scalar_lea.vmem [#allocation8], %s991
          %993 = dma.done %s989, 8192
        $region56: #{tpu_custom_call.1} parent=51 // pred_fallthru
          _
      $region52: #{tpu_custom_call.1} parent=5 // pred_fallthru
        _
    $region6: #{tpu_custom_call.1} parent=1 // loop_footer
      %s22 = sadd.s32 1, %s18
    $region7: #{tpu_custom_call.1} parent=1 // loop_footer_branch
      %17 = sbr.rel target = $region3
    $region8: #{tpu_custom_call.1} parent=1 // loop_exit
      _
    %994 = vsyncpa [#allocation3], 1
    %s995 = scalar_lea.sflag [#allocation3], 1
    %996 = vsyncpa %s995, 1
    %997 = vsyncpa [#allocation6], 1
    %s998 = scalar_lea.sflag [#allocation6], 1
    %999 = vsyncpa %s998, 1
    %1000 = vsyncpa [#allocation4], 1
    %s1001 = scalar_lea.sflag [#allocation4], 1
    %1002 = vsyncpa %s1001, 1

// kernel: tpu_custom_call.1
$region0: #{tpu_custom_call.1}
  #allocation0 [shape = 'u32[]', space=smem, size = 0x4, offset = 0x4, fixed_abs, tag = 'smem constant byte address 0x4 - core index']
  #allocation1 [shape = 'u32[144,128]{1,0:T(1,128)}', space=vmem, size = 0x12000, scoped, tag = 'internal scratch']
  %s0 = inlined_call_operand.hbm [shape: bf16[2,1024,128], index: 0, kind: input, shape index: {}]
  %s1 = inlined_call_operand.hbm [shape: bf16[4,128,128], index: 1, kind: input, shape index: {}]
  %s2 = inlined_call_operand.hbm [shape: f32[1,128], index: 2, kind: input, shape index: {}]
  %s3 = inlined_call_operand.hbm [shape: f32[8,1024,128], index: 3, kind: output, shape index: {}]
  %s4 = sld [smem:[#allocation0]]
  $region57: #{tpu_custom_call.1} parent=0
    _
  %s6 = ssub.s32 1, %s4
  %s7 = scalar_select 0, %s6, %s4
  $region1: #{tpu_custom_call.1} parent=0
    #allocation2 [shape = 'u8[262144]{0}', space=vmem, size = 0x40000, scoped, tag = 'input window, operand 0']
    #allocation3 [shape = 's32[2]{0}', space=sflag, size = 0x8, scoped, tag = 'scoped memory for tpu_custom_call.1']
    #allocation4 [shape = 's32[2]{0}', space=sflag, size = 0x8, scoped, tag = 'scoped memory for tpu_custom_call.1']
    #allocation5 [shape = 'u8[65536]{0}', space=vmem, size = 0x10000, scoped, tag = 'input window, operand 1']
    #allocation6 [shape = 's32[2]{0}', space=sflag, size = 0x8, scoped, tag = 'scoped memory for tpu_custom_call.1']
    #allocation7 [shape = 'u8[512]{0}', space=vmem, size = 0x400, scoped, tag = 'input window, operand 2, single buffered']
    #allocation8 [shape = 'u8[524288]{0}', space=vmem, size = 0x80000, scoped, tag = 'output window, operand 0']
    %8 = vsyncpa [#allocation3], 0
    %s9 = scalar_lea.sflag [#allocation3], 1
    %10 = vsyncpa %s9, 0
    %11 = vsyncpa [#allocation6], 0
    %s12 = scalar_lea.sflag [#allocation6], 1
    %13 = vsyncpa %s12, 0
    %14 = vsyncpa [#allocation4], 0
    %s15 = scalar_lea.sflag [#allocation4], 1
    %16 = vsyncpa %s15, 0
    loop: start=0, step=1, limit=18
    $region2: #{tpu_custom_call.1} parent=1 // loop_pre_header
      _
    $region3: #{tpu_custom_call.1} parent=1 // loop_header
      %s18 = sphi 0, %s22
      %p19 = scmp.ge.s32.totalorder %s18, 18
      %s25 = sphi 0, %s44
      %s26 = sphi 0, %s40
      %s27 = sphi 0, %s36
      %s28 = sphi 0, %s25
      %s29 = sphi 0, %s26
      %s30 = sphi 0, %s27
      %s31 = sphi 0, %s28
      %s32 = sphi 0, %s29
      %s33 = sphi 0, %s30
      %s49 = sphi 0, %s51
      %s52 = sphi 0, %s49
      %s53 = sphi 0, %s52
      %s69 = sphi 0, %s53
      %s75 = sphi 0, %s77
      %s78 = sphi 0, %s75
      %s79 = sphi 0, %s78
      %s95 = sphi 0, %s79
      %s99 = sphi 0, %s99
      %s101 = sphi 0, %s99
      %s102 = sphi 0, %s101
      %s116 = sphi 0, %s102
      %s128 = sphi 0, %s130
      %s131 = sphi 0, %s128
      %s132 = sphi 0, %s131
      %s148 = sphi 0, %s132
    $region4: #{tpu_custom_call.1} parent=1 // loop_header_branch
      %21 = sbr.rel (%p19) target = $region8
    $region5: #{tpu_custom_call.1} parent=1 // loop_body
      %s23 = ssub.s32 %s18, 1
      %s24 = ssub.s32 %s18, 2
      %s34 = sadd.s32 1, %s27
      %p35 = scmp.ge.s32.totalorder %s34, 4
      %s36 = scalar_select %p35, 0, %s34
      %s37 = sadd.s32 1, %s26
      %s38 = scalar_select %p35, %s37, %s26
      %p39 = scmp.ge.s32.totalorder %s38, 2
      %s40 = scalar_select %p39, 0, %s38
      %s41 = sadd.s32 1, %s25
      %s42 = scalar_select %p39, %s41, %s25
      %p43 = scmp.ge.s32.totalorder %s42, 2
      %s44 = scalar_select %p43, 0, %s42
      %s45 = ssub.s32 %s25, %s44
      %s46 = ssub.s32 %s26, %s40
      %s47 = sor.u32 %s45, %s46
      %p48 = scmp.eq.s32.totalorder %s47, 0
      %s50 = sadd.s32 %s49, 1
      %s51 = scalar_select %p48, %s49, %s50
      %p54 = pneg %p48
      %p55 = scmp.eq.s32.totalorder %s18, 15
      %p56 = por %p54, %p55
      %p57 = scmp.ne.s32.totalorder %s49, %s52
      %p58 = scmp.eq.s32.totalorder %s18, 0
      %p59 = por %p57, %p58
      %p60 = scmp.ne.s32.totalorder %s49, %s52
      %p61 = scmp.eq.s32.totalorder %s23, 15
      %p62 = por %p60, %p61
      %p63 = scmp.ne.s32.totalorder %s52, %s53
      %p64 = scmp.eq.s32.totalorder %s23, 0
      %p65 = por %p63, %p64
      %p66 = scmp.ne.s32.totalorder %s52, %s53
      %p67 = scmp.eq.s32.totalorder %s24, 15
      %p68 = por %p66, %p67
      %p70 = scmp.ne.s32.totalorder %s53, %s69
      %p71 = scmp.eq.s32.totalorder %s24, 0
      %p72 = por %p70, %p71
      %s73 = ssub.s32 %s27, %s36
      %p74 = scmp.eq.s32.totalorder %s73, 0
      %s76 = sadd.s32 %s75, 1
      %s77 = scalar_select %p74, %s75, %s76
      %p80 = pneg %p74
      %p81 = scmp.eq.s32.totalorder %s18, 15
      %p82 = por %p80, %p81
      %p83 = scmp.ne.s32.totalorder %s75, %s78
      %p84 = scmp.eq.s32.totalorder %s18, 0
      %p85 = por %p83, %p84
      %p86 = scmp.ne.s32.totalorder %s75, %s78
      %p87 = scmp.eq.s32.totalorder %s23, 15
      %p88 = por %p86, %p87
      %p89 = scmp.ne.s32.totalorder %s78, %s79
      %p90 = scmp.eq.s32.totalorder %s23, 0
      %p91 = por %p89, %p90
      %p92 = scmp.ne.s32.totalorder %s78, %s79
      %p93 = scmp.eq.s32.totalorder %s24, 15
      %p94 = por %p92, %p93
      %p96 = scmp.ne.s32.totalorder %s79, %s95
      %p97 = scmp.eq.s32.totalorder %s24, 0
      %p98 = por %p96, %p97
      %s100 = sadd.s32 %s99, 1
      %p103 = scmp.eq.s32.totalorder %s18, 15
      %p104 = scmp.ne.s32.totalorder %s99, %s101
      %p105 = scmp.eq.s32.totalorder %s18, 0
      %p106 = por %p104, %p105
      %p107 = scmp.ne.s32.totalorder %s99, %s101
      %p108 = scmp.eq.s32.totalorder %s23, 15
      %p109 = por %p107, %p108
      %p110 = scmp.ne.s32.totalorder %s101, %s102
      %p111 = scmp.eq.s32.totalorder %s23, 0
      %p112 = por %p110, %p111
      %p113 = scmp.ne.s32.totalorder %s101, %s102
      %p114 = scmp.eq.s32.totalorder %s24, 15
      %p115 = por %p113, %p114
      %p117 = scmp.ne.s32.totalorder %s102, %s116
      %p118 = scmp.eq.s32.totalorder %s24, 0
      %p119 = por %p117, %p118
      %s120 = smul.u32 %s25, 4
      %s121 = sadd.s32 %s120, %s27
      %s122 = smul.u32 %s44, 4
      %s123 = sadd.s32 %s122, %s36
      %s124 = ssub.s32 %s121, %s123
      %s125 = ssub.s32 %s26, %s40
      %s126 = sor.u32 %s124, %s125
      %p127 = scmp.eq.s32.totalorder %s126, 0
      %s129 = sadd.s32 %s128, 1
      %s130 = scalar_select %p127, %s128, %s129
      %p133 = pneg %p127
      %p134 = scmp.eq.s32.totalorder %s18, 15
      %p135 = por %p133, %p134
      %p136 = scmp.ne.s32.totalorder %s128, %s131
      %p137 = scmp.eq.s32.totalorder %s18, 0
      %p138 = por %p136, %p137
      %p139 = scmp.ne.s32.totalorder %s128, %s131
      %p140 = scmp.eq.s32.totalorder %s23, 15
      %p141 = por %p139, %p140
      %p142 = scmp.ne.s32.totalorder %s131, %s132
      %p143 = scmp.eq.s32.totalorder %s23, 0
      %p144 = por %p142, %p143
      %p145 = scmp.ne.s32.totalorder %s131, %s132
      %p146 = scmp.eq.s32.totalorder %s24, 15
      %p147 = por %p145, %p146
      %p149 = scmp.ne.s32.totalorder %s132, %s148
      %p150 = scmp.eq.s32.totalorder %s24, 0
      %p151 = por %p149, %p150
      %p152 = scmp.le.s32.totalorder 1, %s18
      %p153 = scmp.lt.s32.totalorder %s18, 17
      %p154 = pnand %p152, %p153
      %p155 = pneg %p154
      // Predicated region
      $region9: #{tpu_custom_call.1} parent=5 // pred_check
        _
      $region10: #{tpu_custom_call.1} parent=5 // pred_check_branch
        %157 = sbr.rel (%p154) target = $region12
      $region11: #{tpu_custom_call.1} parent=5 // pred_region
        %s158 = ssub.s32 %s18, 1
        // Predicated region
        $region13: #{tpu_custom_call.1} parent=11 // pred_check
          %p159 = pneg %p112
        $region14: #{tpu_custom_call.1} parent=11 // pred_check_branch
          %161 = sbr.rel (%p159) target = $region16
        $region15: #{tpu_custom_call.1} parent=11 // pred_region
          %s163 = ssub.s32 16, 16
          %164 = vsyncadd [#allocation6], %s163
          %s166 = sshll.u32 [#allocation7], 4
          %s167 = int_to_ptr.vmem [resolvable:$true] %s166
          %169 = dma.hbm_to_vmem [thread:$0]  %s2, 16, %s167, [#allocation6]
        $region16: #{tpu_custom_call.1} parent=11 // pred_fallthru
          _
      $region12: #{tpu_custom_call.1} parent=5 // pred_fallthru
        _
      %p170 = scmp.lt.s32.totalorder %s18, 16
      // Predicated region
      $region17: #{tpu_custom_call.1} parent=5 // pred_check
        %p171 = pneg %p170
      $region18: #{tpu_custom_call.1} parent=5 // pred_check_branch
        %173 = sbr.rel (%p171) target = $region20
      $region19: #{tpu_custom_call.1} parent=5 // pred_region
        // Predicated region
        $region21: #{tpu_custom_call.1} parent=19 // pred_check
          %p174 = pneg %p59
        $region22: #{tpu_custom_call.1} parent=19 // pred_check_branch
          %176 = sbr.rel (%p174) target = $region24
        $region23: #{tpu_custom_call.1} parent=19 // pred_region
          %s177 = sand.u32 %s49, 1
          %s178 = scalar_lea.sflag [#allocation3], %s177
          %s179 = sand.u32 %s49, 1
          %s180 = smul.addr %s179, 256
          %s181 = scalar_lea.vmem [#allocation2], %s180
          %s182 = smul.u32 64, %s26
          %s184 = ssub.s32 4096, 4096
          %185 = vsyncadd %s178, %s184
          %s186 = smul.addr %s25, 128
          %s187 = sadd.s32 %s182, %s186
          %s188 = smul.addr %s187, 64
          %s189 = scalar_lea.hbm %s0, %s188
          %s190 = sshll.u32 %s181, 4
          %s191 = int_to_ptr.vmem [resolvable:$true] %s190
          %196 = dma.hbm_to_vmem [thread:$0]  %s189, 4096, %s191, %s178, 64, 64, 4
        $region24: #{tpu_custom_call.1} parent=19 // pred_fallthru
          _
        // Predicated region
        $region25: #{tpu_custom_call.1} parent=19 // pred_check
          %p197 = pneg %p85
        $region26: #{tpu_custom_call.1} parent=19 // pred_check_branch
          %199 = sbr.rel (%p197) target = $region28
        $region27: #{tpu_custom_call.1} parent=19 // pred_region
          %s200 = sand.u32 %s18, 1
          %s201 = scalar_lea.sflag [#allocation6], %s200
          %s202 = sand.u32 %s75, 1
          %s203 = smul.addr %s202, 64
          %s204 = scalar_lea.vmem [#allocation5], %s203
          %s206 = ssub.s32 1024, 1024
          %207 = vsyncadd %s201, %s206
          %s208 = smul.addr %s27, 16
          %s209 = smul.addr %s208, 64
          %s210 = scalar_lea.hbm %s1, %s209
          %s211 = sshll.u32 %s204, 4
          %s212 = int_to_ptr.vmem [resolvable:$true] %s211
          %217 = dma.hbm_to_vmem [thread:$0]  %s210, 1024, %s212, %s201, 64, 64, 4
        $region28: #{tpu_custom_call.1} parent=19 // pred_fallthru
          _
      $region20: #{tpu_custom_call.1} parent=5 // pred_fallthru
        _
      %p218 = scmp.le.s32.totalorder 1, %s18
      %p219 = scmp.lt.s32.totalorder %s18, 17
      %p220 = pnand %p218, %p219
      %p221 = pneg %p220
      // Predicated region
      $region29: #{tpu_custom_call.1} parent=5 // pred_check
        _
      $region30: #{tpu_custom_call.1} parent=5 // pred_check_branch
        %223 = sbr.rel (%p220) target = $region32
      $region31: #{tpu_custom_call.1} parent=5 // pred_region
        %s224 = ssub.s32 %s18, 1
        %s225 = sand.u32 %s52, 1
        %s226 = scalar_lea.sflag [#allocation3], %s225
        %s227 = sand.u32 %s52, 1
        %s228 = smul.addr %s227, 256
        %s229 = scalar_lea.vmem [#allocation2], %s228
        // Predicated region
        $region33: #{tpu_custom_call.1} parent=31 // pred_check
          %p230 = pneg %p65
        $region34: #{tpu_custom_call.1} parent=31 // pred_check_branch
          %232 = sbr.rel (%p230) target = $region36
        $region35: #{tpu_custom_call.1} parent=31 // pred_region
          %233 = dma.done %s226, 4096
        $region36: #{tpu_custom_call.1} parent=31 // pred_fallthru
          _
        %s234 = sand.u32 %s23, 1
        %s235 = scalar_lea.sflag [#allocation6], %s234
        %s236 = sand.u32 %s78, 1
        %s237 = smul.addr %s236, 64
        %s238 = scalar_lea.vmem [#allocation5], %s237
        // Predicated region
        $region37: #{tpu_custom_call.1} parent=31 // pred_check
          %p239 = pneg %p91
        $region38: #{tpu_custom_call.1} parent=31 // pred_check_branch
          %241 = sbr.rel (%p239) target = $region40
        $region39: #{tpu_custom_call.1} parent=31 // pred_region
          %242 = dma.done %s235, 1024
        $region40: #{tpu_custom_call.1} parent=31 // pred_fallthru
          _
        // Predicated region
        $region41: #{tpu_custom_call.1} parent=31 // pred_check
          %p243 = pneg %p112
        $region42: #{tpu_custom_call.1} parent=31 // pred_check_branch
          %245 = sbr.rel (%p243) target = $region44
        $region43: #{tpu_custom_call.1} parent=31 // pred_region
          %246 = dma.done [#allocation6], 16
        $region44: #{tpu_custom_call.1} parent=31 // pred_fallthru
          _
        %s247 = sand.u32 %s52, 1
        %s248 = scalar_lea.sflag [#allocation3], %s247
        %s249 = sand.u32 %s52, 1
        %s250 = smul.addr %s249, 256
        %s251 = scalar_lea.vmem [#allocation2], %s250
        %p252 = pneg %p65
        %p253 = pneg %p62
        %s254 = sand.u32 %s23, 1
        %s255 = scalar_lea.sflag [#allocation6], %s254
        %s256 = sand.u32 %s78, 1
        %s257 = smul.addr %s256, 64
        %s258 = scalar_lea.vmem [#allocation5], %s257
        %p259 = pneg %p91
        %p260 = pneg %p88
        %p261 = pneg %p112
        %p262 = pneg %p109
        %p263 = pneg %p144
        %p264 = pneg %p141
        %s265 = sand.u32 %s131, 1
        %s266 = scalar_lea.sflag [#allocation4], %s265
        %s267 = sand.u32 %s131, 1
        %s268 = smul.addr %s267, 512
        %s269 = scalar_lea.vmem [#allocation8], %s268
        %s270 = smul.u32 64, %s29
        %s271 = smul.u32 %s28, 4
        %s272 = sadd.s32 %s271, %s30
        %s273 = smul.u32 64, %s29
        %v275 = vld [vmem:[%s229] sm:$0xf]
        %v276 = vld [vmem:[%s229 + $0x4] sm:$0xf]
        %v277 = vld [vmem:[%s229 + $0x8] sm:$0xf]
        %v278 = vld [vmem:[%s229 + $0xc] sm:$0xf]
        %v279 = vld [vmem:[%s229 + $0x10] sm:$0xf]
        %v280 = vld [vmem:[%s229 + $0x14] sm:$0xf]
        %v281 = vld [vmem:[%s229 + $0x18] sm:$0xf]
        %v282 = vld [vmem:[%s229 + $0x1c] sm:$0xf]
        %v283 = vld [vmem:[%s229 + $0x20] sm:$0xf]
        %v284 = vld [vmem:[%s229 + $0x24] sm:$0xf]
        %v285 = vld [vmem:[%s229 + $0x28] sm:$0xf]
        %v286 = vld [vmem:[%s229 + $0x2c] sm:$0xf]
        %v287 = vld [vmem:[%s229 + $0x30] sm:$0xf]
        %v288 = vld [vmem:[%s229 + $0x34] sm:$0xf]
        %v289 = vld [vmem:[%s229 + $0x38] sm:$0xf]
        %v290 = vld [vmem:[%s229 + $0x3c] sm:$0xf]
        %v291 = vld [vmem:[%s229 + $0x40] sm:$0xf]
        %v292 = vld [vmem:[%s229 + $0x44] sm:$0xf]
        %v293 = vld [vmem:[%s229 + $0x48] sm:$0xf]
        %v294 = vld [vmem:[%s229 + $0x4c] sm:$0xf]
        %v295 = vld [vmem:[%s229 + $0x50] sm:$0xf]
        %v296 = vld [vmem:[%s229 + $0x54] sm:$0xf]
        %v297 = vld [vmem:[%s229 + $0x58] sm:$0xf]
        %v298 = vld [vmem:[%s229 + $0x5c] sm:$0xf]
        %v299 = vld [vmem:[%s229 + $0x60] sm:$0xf]
        %v300 = vld [vmem:[%s229 + $0x64] sm:$0xf]
        %v301 = vld [vmem:[%s229 + $0x68] sm:$0xf]
        %v302 = vld [vmem:[%s229 + $0x6c] sm:$0xf]
        %v303 = vld [vmem:[%s229 + $0x70] sm:$0xf]
        %v304 = vld [vmem:[%s229 + $0x74] sm:$0xf]
        %v305 = vld [vmem:[%s229 + $0x78] sm:$0xf]
        %v306 = vld [vmem:[%s229 + $0x7c] sm:$0xf]
        %v307 = vld [vmem:[%s229 + $0x80] sm:$0xf]
        %v308 = vld [vmem:[%s229 + $0x84] sm:$0xf]
        %v309 = vld [vmem:[%s229 + $0x88] sm:$0xf]
        %v310 = vld [vmem:[%s229 + $0x8c] sm:$0xf]
        %v311 = vld [vmem:[%s229 + $0x90] sm:$0xf]
        %v312 = vld [vmem:[%s229 + $0x94] sm:$0xf]
        %v313 = vld [vmem:[%s229 + $0x98] sm:$0xf]
        %v314 = vld [vmem:[%s229 + $0x9c] sm:$0xf]
        %v315 = vld [vmem:[%s229 + $0xa0] sm:$0xf]
        %v316 = vld [vmem:[%s229 + $0xa4] sm:$0xf]
        %v317 = vld [vmem:[%s229 + $0xa8] sm:$0xf]
        %v318 = vld [vmem:[%s229 + $0xac] sm:$0xf]
        %v319 = vld [vmem:[%s229 + $0xb0] sm:$0xf]
        %v320 = vld [vmem:[%s229 + $0xb4] sm:$0xf]
        %v321 = vld [vmem:[%s229 + $0xb8] sm:$0xf]
        %v322 = vld [vmem:[%s229 + $0xbc] sm:$0xf]
        %v323 = vld [vmem:[%s229 + $0xc0] sm:$0xf]
        %v324 = vld [vmem:[%s229 + $0xc4] sm:$0xf]
        %v325 = vld [vmem:[%s229 + $0xc8] sm:$0xf]
        %v326 = vld [vmem:[%s229 + $0xcc] sm:$0xf]
        %v327 = vld [vmem:[%s229 + $0xd0] sm:$0xf]
        %v328 = vld [vmem:[%s229 + $0xd4] sm:$0xf]
        %v329 = vld [vmem:[%s229 + $0xd8] sm:$0xf]
        %v330 = vld [vmem:[%s229 + $0xdc] sm:$0xf]
        %v331 = vld [vmem:[%s229 + $0xe0] sm:$0xf]
        %v332 = vld [vmem:[%s229 + $0xe4] sm:$0xf]
        %v333 = vld [vmem:[%s229 + $0xe8] sm:$0xf]
        %v334 = vld [vmem:[%s229 + $0xec] sm:$0xf]
        %v335 = vld [vmem:[%s229 + $0xf0] sm:$0xf]
        %v336 = vld [vmem:[%s229 + $0xf4] sm:$0xf]
        %v337 = vld [vmem:[%s229 + $0xf8] sm:$0xf]
        %v338 = vld [vmem:[%s229 + $0xfc] sm:$0xf]
        %v339 = vld [vmem:[%s238] sm:$0xf]
        %v340 = vld [vmem:[%s238 + $0x4] sm:$0xf]
        %v341 = vld [vmem:[%s238 + $0x8] sm:$0xf]
        %v342 = vld [vmem:[%s238 + $0xc] sm:$0xf]
        %v343 = vld [vmem:[%s238 + $0x10] sm:$0xf]
        %v344 = vld [vmem:[%s238 + $0x14] sm:$0xf]
        %v345 = vld [vmem:[%s238 + $0x18] sm:$0xf]
        %v346 = vld [vmem:[%s238 + $0x1c] sm:$0xf]
        %v347 = vld [vmem:[%s238 + $0x20] sm:$0xf]
        %v348 = vld [vmem:[%s238 + $0x24] sm:$0xf]
        %v349 = vld [vmem:[%s238 + $0x28] sm:$0xf]
        %v350 = vld [vmem:[%s238 + $0x2c] sm:$0xf]
        %v351 = vld [vmem:[%s238 + $0x30] sm:$0xf]
        %v352 = vld [vmem:[%s238 + $0x34] sm:$0xf]
        %v353 = vld [vmem:[%s238 + $0x38] sm:$0xf]
        %v354 = vld [vmem:[%s238 + $0x3c] sm:$0xf]
        %v355 = vld [vmem:[#allocation7] sm:$0x1]
        %v357 = vlaneseq
        %v358 = vshrl.u32 %v357, 7
        %v359 = vsub.s32 0, %v358
        %v360 = vrot.slane %v355, %v359
        %v426 = vunpack.c.l.b16 %v275
        %v427 = vunpack.c.l.b16 %v276
        %v428 = vunpack.c.l.b16 %v277
        %v429 = vunpack.c.l.b16 %v278
        %v430 = vunpack.c.l.b16 %v279
        %v431 = vunpack.c.l.b16 %v280
        %v432 = vunpack.c.l.b16 %v281
        %v433 = vunpack.c.l.b16 %v282
        %v434 = vunpack.c.l.b16 %v283
        %v435 = vunpack.c.l.b16 %v284
        %v436 = vunpack.c.l.b16 %v285
        %v437 = vunpack.c.l.b16 %v286
        %v438 = vunpack.c.l.b16 %v287
        %v439 = vunpack.c.l.b16 %v288
        %v440 = vunpack.c.l.b16 %v289
        %v441 = vunpack.c.l.b16 %v290
        %v442 = vunpack.c.l.b16 %v291
        %v443 = vunpack.c.l.b16 %v292
        %v444 = vunpack.c.l.b16 %v293
        %v445 = vunpack.c.l.b16 %v294
        %v446 = vunpack.c.l.b16 %v295
        %v447 = vunpack.c.l.b16 %v296
        %v448 = vunpack.c.l.b16 %v297
        %v449 = vunpack.c.l.b16 %v298
        %v450 = vunpack.c.l.b16 %v299
        %v451 = vunpack.c.l.b16 %v300
        %v452 = vunpack.c.l.b16 %v301
        %v453 = vunpack.c.l.b16 %v302
        %v454 = vunpack.c.l.b16 %v303
        %v455 = vunpack.c.l.b16 %v304
        %v456 = vunpack.c.l.b16 %v305
        %v457 = vunpack.c.l.b16 %v306
        %v458 = vunpack.c.l.b16 %v307
        %v459 = vunpack.c.l.b16 %v308
        %v460 = vunpack.c.l.b16 %v309
        %v461 = vunpack.c.l.b16 %v310
        %v462 = vunpack.c.l.b16 %v311
        %v463 = vunpack.c.l.b16 %v312
        %v464 = vunpack.c.l.b16 %v313
        %v465 = vunpack.c.l.b16 %v314
        %v466 = vunpack.c.l.b16 %v315
        %v467 = vunpack.c.l.b16 %v316
        %v468 = vunpack.c.l.b16 %v317
        %v469 = vunpack.c.l.b16 %v318
        %v470 = vunpack.c.l.b16 %v319
        %v471 = vunpack.c.l.b16 %v320
        %v472 = vunpack.c.l.b16 %v321
        %v473 = vunpack.c.l.b16 %v322
        %v474 = vunpack.c.l.b16 %v323
        %v475 = vunpack.c.l.b16 %v324
        %v476 = vunpack.c.l.b16 %v325
        %v477 = vunpack.c.l.b16 %v326
        %v478 = vunpack.c.l.b16 %v327
        %v479 = vunpack.c.l.b16 %v328
        %v480 = vunpack.c.l.b16 %v329
        %v481 = vunpack.c.l.b16 %v330
        %v482 = vunpack.c.l.b16 %v331
        %v483 = vunpack.c.l.b16 %v332
        %v484 = vunpack.c.l.b16 %v333
        %v485 = vunpack.c.l.b16 %v334
        %v486 = vunpack.c.l.b16 %v335
        %v487 = vunpack.c.l.b16 %v336
        %v488 = vunpack.c.l.b16 %v337
        %v489 = vunpack.c.l.b16 %v338
        %v490 = vpack.c.b16 %v427, %v426
        %v491 = vpack.c.b16 %v429, %v428
        %v492 = vpack.c.b16 %v431, %v430
        %v493 = vpack.c.b16 %v433, %v432
        %v494 = vpack.c.b16 %v435, %v434
        %v495 = vpack.c.b16 %v437, %v436
        %v496 = vpack.c.b16 %v439, %v438
        %v497 = vpack.c.b16 %v441, %v440
        %v498 = vpack.c.b16 %v443, %v442
        %v499 = vpack.c.b16 %v445, %v444
        %v500 = vpack.c.b16 %v447, %v446
        %v501 = vpack.c.b16 %v449, %v448
        %v502 = vpack.c.b16 %v451, %v450
        %v503 = vpack.c.b16 %v453, %v452
        %v504 = vpack.c.b16 %v455, %v454
        %v505 = vpack.c.b16 %v457, %v456
        %v506 = vpack.c.b16 %v459, %v458
        %v507 = vpack.c.b16 %v461, %v460
        %v508 = vpack.c.b16 %v463, %v462
        %v509 = vpack.c.b16 %v465, %v464
        %v510 = vpack.c.b16 %v467, %v466
        %v511 = vpack.c.b16 %v469, %v468
        %v512 = vpack.c.b16 %v471, %v470
        %v513 = vpack.c.b16 %v473, %v472
        %v514 = vpack.c.b16 %v475, %v474
        %v515 = vpack.c.b16 %v477, %v476
        %v516 = vpack.c.b16 %v479, %v478
        %v517 = vpack.c.b16 %v481, %v480
        %v518 = vpack.c.b16 %v483, %v482
        %v519 = vpack.c.b16 %v485, %v484
        %v520 = vpack.c.b16 %v487, %v486
        %v521 = vpack.c.b16 %v489, %v488
        %v570 = vunpack.c.l.b16 %v339
        %v571 = vunpack.c.l.b16 %v340
        %v572 = vunpack.c.l.b16 %v341
        %v573 = vunpack.c.l.b16 %v342
        %v574 = vunpack.c.l.b16 %v343
        %v575 = vunpack.c.l.b16 %v344
        %v576 = vunpack.c.l.b16 %v345
        %v577 = vunpack.c.l.b16 %v346
        %v578 = vunpack.c.l.b16 %v347
        %v579 = vunpack.c.l.b16 %v348
        %v580 = vunpack.c.l.b16 %v349
        %v581 = vunpack.c.l.b16 %v350
        %v582 = vunpack.c.l.b16 %v351
        %v583 = vunpack.c.l.b16 %v352
        %v584 = vunpack.c.l.b16 %v353
        %v585 = vunpack.c.l.b16 %v354
        %v586 = vpack.c.b16 %v571, %v570
        %v587 = vpack.c.b16 %v573, %v572
        %v588 = vpack.c.b16 %v575, %v574
        %v589 = vpack.c.b16 %v577, %v576
        %v590 = vpack.c.b16 %v579, %v578
        %v591 = vpack.c.b16 %v581, %v580
        %v592 = vpack.c.b16 %v583, %v582
        %v593 = vpack.c.b16 %v585, %v584
        %602 = vmatprep.subr.bf16.mxu0 0
        %603 = vmatpush1.bf16.msra.mxu0 %v586
        %604 = vmatprep.subr.bf16.mxu0 0
        %605 = vmatpush1.bf16.msra.mxu0 %v587
        %606 = vmatprep.subr.bf16.mxu0 0
        %607 = vmatpush1.bf16.msra.mxu0 %v588
        %608 = vmatprep.subr.bf16.mxu0 0
        %609 = vmatpush1.bf16.msra.mxu0 %v589
        %610 = vmatprep.subr.bf16.mxu0 0
        %611 = vmatpush1.bf16.msra.mxu0 %v590
        %612 = vmatprep.subr.bf16.mxu0 0
        %613 = vmatpush1.bf16.msra.mxu0 %v591
        %614 = vmatprep.subr.bf16.mxu0 0
        %615 = vmatpush1.bf16.msra.mxu0 %v592
        %616 = vmatprep.subr.bf16.mxu0 0
        %617 = vmatpush1.bf16.msra.mxu0 %v593
        %618 = vmatprep.subr.bf16.mxu0 0
        %619 = vmatpush1.bf16.msra.mxu0 0
        %620 = vmatprep.subr.bf16.mxu0 0
        %621 = vmatpush1.bf16.msra.mxu0 0
        %622 = vmatprep.subr.bf16.mxu0 0
        %623 = vmatpush1.bf16.msra.mxu0 0
        %624 = vmatprep.subr.bf16.mxu0 0
        %625 = vmatpush1.bf16.msra.mxu0 0
        %626 = vmatprep.subr.bf16.mxu0 0
        %627 = vmatpush1.bf16.msra.mxu0 0
        %628 = vmatprep.subr.bf16.mxu0 0
        %629 = vmatpush1.bf16.msra.mxu0 0
        %630 = vmatprep.subr.bf16.mxu0 0
        %631 = vmatpush1.bf16.msra.mxu0 0
        %632 = vmatprep.subr.bf16.mxu0 0
        %633 = vmatpush1.bf16.msra.mxu0 0
        %634 = vmatprep.mubr.bf16.mxu0 0
        %635 = vmatmul.mubr.bf16.gmra.mrb[0].mxu0 %v490
        %v636 = vpop.f32.mrb[0].mxu0
        %v637 = vadd.f32 %v360, %v636
        %v638 = vpop.f32.mrb[0].mxu0
        %v639 = vpop.f32.mrb[0].mxu0
        %v640 = vadd.f32 %v360, %v639
        %v641 = vpop.f32.mrb[0].mxu0
        %642 = vmatprep.mubr.bf16.mxu0 0
        %643 = vmatmul.mubr.bf16.gmra.mrb[0].mxu0 %v491
        %v644 = vpop.f32.mrb[0].mxu0
        %v645 = vadd.f32 %v360, %v644
        %v646 = vpop.f32.mrb[0].mxu0
        %v647 = vpop.f32.mrb[0].mxu0
        %v648 = vadd.f32 %v360, %v647
        %v649 = vpop.f32.mrb[0].mxu0
        %650 = vmatprep.mubr.bf16.mxu0 0
        %651 = vmatmul.mubr.bf16.gmra.mrb[0].mxu0 %v492
        %v652 = vpop.f32.mrb[0].mxu0
        %v653 = vadd.f32 %v360, %v652
        %v654 = vpop.f32.mrb[0].mxu0
        %v655 = vpop.f32.mrb[0].mxu0
        %v656 = vadd.f32 %v360, %v655
        %v657 = vpop.f32.mrb[0].mxu0
        %658 = vmatprep.mubr.bf16.mxu0 0
        %659 = vmatmul.mubr.bf16.gmra.mrb[0].mxu0 %v493
        %v660 = vpop.f32.mrb[0].mxu0
        %v661 = vadd.f32 %v360, %v660
        %v662 = vpop.f32.mrb[0].mxu0
        %v663 = vpop.f32.mrb[0].mxu0
        %v664 = vadd.f32 %v360, %v663
        %v665 = vpop.f32.mrb[0].mxu0
        %666 = vmatprep.mubr.bf16.mxu0 0
        %667 = vmatmul.mubr.bf16.gmra.mrb[0].mxu0 %v494
        %v668 = vpop.f32.mrb[0].mxu0
        %v669 = vadd.f32 %v360, %v668
        %v670 = vpop.f32.mrb[0].mxu0
        %v671 = vpop.f32.mrb[0].mxu0
        %v672 = vadd.f32 %v360, %v671
        %v673 = vpop.f32.mrb[0].mxu0
        %674 = vmatprep.mubr.bf16.mxu0 0
        %675 = vmatmul.mubr.bf16.gmra.mrb[0].mxu0 %v495
        %v676 = vpop.f32.mrb[0].mxu0
        %v677 = vadd.f32 %v360, %v676
        %v678 = vpop.f32.mrb[0].mxu0
        %v679 = vpop.f32.mrb[0].mxu0
        %v680 = vadd.f32 %v360, %v679
        %v681 = vpop.f32.mrb[0].mxu0
        %682 = vmatprep.mubr.bf16.mxu0 0
        %683 = vmatmul.mubr.bf16.gmra.mrb[0].mxu0 %v496
        %v684 = vpop.f32.mrb[0].mxu0
        %v685 = vadd.f32 %v360, %v684
        %v686 = vpop.f32.mrb[0].mxu0
        %v687 = vpop.f32.mrb[0].mxu0
        %v688 = vadd.f32 %v360, %v687
        %v689 = vpop.f32.mrb[0].mxu0
        %690 = vmatprep.mubr.bf16.mxu0 0
        %691 = vmatmul.mubr.bf16.gmra.mrb[0].mxu0 %v497
        %v692 = vpop.f32.mrb[0].mxu0
        %v693 = vadd.f32 %v360, %v692
        %v694 = vpop.f32.mrb[0].mxu0
        %v695 = vpop.f32.mrb[0].mxu0
        %v696 = vadd.f32 %v360, %v695
        %v697 = vpop.f32.mrb[0].mxu0
        %698 = vmatprep.mubr.bf16.mxu0 0
        %699 = vmatmul.mubr.bf16.gmra.mrb[0].mxu0 %v498
        %v700 = vpop.f32.mrb[0].mxu0
        %v701 = vadd.f32 %v360, %v700
        %v702 = vpop.f32.mrb[0].mxu0
        %v703 = vpop.f32.mrb[0].mxu0
        %v704 = vadd.f32 %v360, %v703
        %v705 = vpop.f32.mrb[0].mxu0
        %706 = vmatprep.mubr.bf16.mxu0 0
        %707 = vmatmul.mubr.bf16.gmra.mrb[0].mxu0 %v499
        %v708 = vpop.f32.mrb[0].mxu0
        %v709 = vadd.f32 %v360, %v708
        %v710 = vpop.f32.mrb[0].mxu0
        %v711 = vpop.f32.mrb[0].mxu0
        %v712 = vadd.f32 %v360, %v711
        %v713 = vpop.f32.mrb[0].mxu0
        %714 = vmatprep.mubr.bf16.mxu0 0
        %715 = vmatmul.mubr.bf16.gmra.mrb[0].mxu0 %v500
        %v716 = vpop.f32.mrb[0].mxu0
        %v717 = vadd.f32 %v360, %v716
        %v718 = vpop.f32.mrb[0].mxu0
        %v719 = vpop.f32.mrb[0].mxu0
        %v720 = vadd.f32 %v360, %v719
        %v721 = vpop.f32.mrb[0].mxu0
        %722 = vmatprep.mubr.bf16.mxu0 0
        %723 = vmatmul.mubr.bf16.gmra.mrb[0].mxu0 %v501
        %v724 = vpop.f32.mrb[0].mxu0
        %v725 = vadd.f32 %v360, %v724
        %v726 = vpop.f32.mrb[0].mxu0
        %v727 = vpop.f32.mrb[0].mxu0
        %v728 = vadd.f32 %v360, %v727
        %v729 = vpop.f32.mrb[0].mxu0
        %730 = vmatprep.mubr.bf16.mxu0 0
        %731 = vmatmul.mubr.bf16.gmra.mrb[0].mxu0 %v502
        %v732 = vpop.f32.mrb[0].mxu0
        %v733 = vadd.f32 %v360, %v732
        %v734 = vpop.f32.mrb[0].mxu0
        %v735 = vpop.f32.mrb[0].mxu0
        %v736 = vadd.f32 %v360, %v735
        %v737 = vpop.f32.mrb[0].mxu0
        %738 = vmatprep.mubr.bf16.mxu0 0
        %739 = vmatmul.mubr.bf16.gmra.mrb[0].mxu0 %v503
        %v740 = vpop.f32.mrb[0].mxu0
        %v741 = vadd.f32 %v360, %v740
        %v742 = vpop.f32.mrb[0].mxu0
        %v743 = vpop.f32.mrb[0].mxu0
        %v744 = vadd.f32 %v360, %v743
        %v745 = vpop.f32.mrb[0].mxu0
        %746 = vmatprep.mubr.bf16.mxu0 0
        %747 = vmatmul.mubr.bf16.gmra.mrb[0].mxu0 %v504
        %v748 = vpop.f32.mrb[0].mxu0
        %v749 = vadd.f32 %v360, %v748
        %v750 = vpop.f32.mrb[0].mxu0
        %v751 = vpop.f32.mrb[0].mxu0
        %v752 = vadd.f32 %v360, %v751
        %v753 = vpop.f32.mrb[0].mxu0
        %754 = vmatprep.mubr.bf16.mxu0 0
        %755 = vmatmul.mubr.bf16.gmra.mrb[0].mxu0 %v505
        %v756 = vpop.f32.mrb[0].mxu0
        %v757 = vadd.f32 %v360, %v756
        %v758 = vpop.f32.mrb[0].mxu0
        %v759 = vpop.f32.mrb[0].mxu0
        %v760 = vadd.f32 %v360, %v759
        %v761 = vpop.f32.mrb[0].mxu0
        %762 = vmatprep.mubr.bf16.mxu0 0
        %763 = vmatmul.mubr.bf16.gmra.mrb[0].mxu0 %v506
        %v764 = vpop.f32.mrb[0].mxu0
        %v765 = vadd.f32 %v360, %v764
        %v766 = vpop.f32.mrb[0].mxu0
        %v767 = vpop.f32.mrb[0].mxu0
        %v768 = vadd.f32 %v360, %v767
        %v769 = vpop.f32.mrb[0].mxu0
        %770 = vmatprep.mubr.bf16.mxu0 0
        %771 = vmatmul.mubr.bf16.gmra.mrb[0].mxu0 %v507
        %v772 = vpop.f32.mrb[0].mxu0
        %v773 = vadd.f32 %v360, %v772
        %v774 = vpop.f32.mrb[0].mxu0
        %v775 = vpop.f32.mrb[0].mxu0
        %v776 = vadd.f32 %v360, %v775
        %v777 = vpop.f32.mrb[0].mxu0
        %778 = vmatprep.mubr.bf16.mxu0 0
        %779 = vmatmul.mubr.bf16.gmra.mrb[0].mxu0 %v508
        %v780 = vpop.f32.mrb[0].mxu0
        %v781 = vadd.f32 %v360, %v780
        %v782 = vpop.f32.mrb[0].mxu0
        %v783 = vpop.f32.mrb[0].mxu0
        %v784 = vadd.f32 %v360, %v783
        %v785 = vpop.f32.mrb[0].mxu0
        %786 = vmatprep.mubr.bf16.mxu0 0
        %787 = vmatmul.mubr.bf16.gmra.mrb[0].mxu0 %v509
        %v788 = vpop.f32.mrb[0].mxu0
        %v789 = vadd.f32 %v360, %v788
        %v790 = vpop.f32.mrb[0].mxu0
        %v791 = vpop.f32.mrb[0].mxu0
        %v792 = vadd.f32 %v360, %v791
        %v793 = vpop.f32.mrb[0].mxu0
        %794 = vmatprep.mubr.bf16.mxu0 0
        %795 = vmatmul.mubr.bf16.gmra.mrb[0].mxu0 %v510
        %v796 = vpop.f32.mrb[0].mxu0
        %v797 = vadd.f32 %v360, %v796
        %v798 = vpop.f32.mrb[0].mxu0
        %v799 = vpop.f32.mrb[0].mxu0
        %v800 = vadd.f32 %v360, %v799
        %v801 = vpop.f32.mrb[0].mxu0
        %802 = vmatprep.mubr.bf16.mxu0 0
        %803 = vmatmul.mubr.bf16.gmra.mrb[0].mxu0 %v511
        %v804 = vpop.f32.mrb[0].mxu0
        %v805 = vadd.f32 %v360, %v804
        %v806 = vpop.f32.mrb[0].mxu0
        %v807 = vpop.f32.mrb[0].mxu0
        %v808 = vadd.f32 %v360, %v807
        %v809 = vpop.f32.mrb[0].mxu0
        %810 = vmatprep.mubr.bf16.mxu0 0
        %811 = vmatmul.mubr.bf16.gmra.mrb[0].mxu0 %v512
        %v812 = vpop.f32.mrb[0].mxu0
        %v813 = vadd.f32 %v360, %v812
        %v814 = vpop.f32.mrb[0].mxu0
        %v815 = vpop.f32.mrb[0].mxu0
        %v816 = vadd.f32 %v360, %v815
        %v817 = vpop.f32.mrb[0].mxu0
        %818 = vmatprep.mubr.bf16.mxu0 0
        %819 = vmatmul.mubr.bf16.gmra.mrb[0].mxu0 %v513
        %v820 = vpop.f32.mrb[0].mxu0
        %v821 = vadd.f32 %v360, %v820
        %v822 = vpop.f32.mrb[0].mxu0
        %v823 = vpop.f32.mrb[0].mxu0
        %v824 = vadd.f32 %v360, %v823
        %v825 = vpop.f32.mrb[0].mxu0
        %826 = vmatprep.mubr.bf16.mxu0 0
        %827 = vmatmul.mubr.bf16.gmra.mrb[0].mxu0 %v514
        %v828 = vpop.f32.mrb[0].mxu0
        %v829 = vadd.f32 %v360, %v828
        %v830 = vpop.f32.mrb[0].mxu0
        %v831 = vpop.f32.mrb[0].mxu0
        %v832 = vadd.f32 %v360, %v831
        %v833 = vpop.f32.mrb[0].mxu0
        %834 = vmatprep.mubr.bf16.mxu0 0
        %835 = vmatmul.mubr.bf16.gmra.mrb[0].mxu0 %v515
        %v836 = vpop.f32.mrb[0].mxu0
        %v837 = vadd.f32 %v360, %v836
        %v838 = vpop.f32.mrb[0].mxu0
        %v839 = vpop.f32.mrb[0].mxu0
        %v840 = vadd.f32 %v360, %v839
        %v841 = vpop.f32.mrb[0].mxu0
        %842 = vmatprep.mubr.bf16.mxu0 0
        %843 = vmatmul.mubr.bf16.gmra.mrb[0].mxu0 %v516
        %v844 = vpop.f32.mrb[0].mxu0
        %v845 = vadd.f32 %v360, %v844
        %v846 = vpop.f32.mrb[0].mxu0
        %v847 = vpop.f32.mrb[0].mxu0
        %v848 = vadd.f32 %v360, %v847
        %v849 = vpop.f32.mrb[0].mxu0
        %850 = vmatprep.mubr.bf16.mxu0 0
        %851 = vmatmul.mubr.bf16.gmra.mrb[0].mxu0 %v517
        %v852 = vpop.f32.mrb[0].mxu0
        %v853 = vadd.f32 %v360, %v852
        %v854 = vpop.f32.mrb[0].mxu0
        %v855 = vpop.f32.mrb[0].mxu0
        %v856 = vadd.f32 %v360, %v855
        %v857 = vpop.f32.mrb[0].mxu0
        %858 = vmatprep.mubr.bf16.mxu0 0
        %859 = vmatmul.mubr.bf16.gmra.mrb[0].mxu0 %v518
        %v860 = vpop.f32.mrb[0].mxu0
        %v861 = vadd.f32 %v360, %v860
        %v862 = vpop.f32.mrb[0].mxu0
        %v863 = vpop.f32.mrb[0].mxu0
        %v864 = vadd.f32 %v360, %v863
        %v865 = vpop.f32.mrb[0].mxu0
        %866 = vmatprep.mubr.bf16.mxu0 0
        %867 = vmatmul.mubr.bf16.gmra.mrb[0].mxu0 %v519
        %v868 = vpop.f32.mrb[0].mxu0
        %v869 = vadd.f32 %v360, %v868
        %v870 = vpop.f32.mrb[0].mxu0
        %v871 = vpop.f32.mrb[0].mxu0
        %v872 = vadd.f32 %v360, %v871
        %v873 = vpop.f32.mrb[0].mxu0
        %874 = vmatprep.mubr.bf16.mxu0 0
        %875 = vmatmul.mubr.bf16.gmra.mrb[0].mxu0 %v520
        %v876 = vpop.f32.mrb[0].mxu0
        %v877 = vadd.f32 %v360, %v876
        %v878 = vpop.f32.mrb[0].mxu0
        %v879 = vpop.f32.mrb[0].mxu0
        %v880 = vadd.f32 %v360, %v879
        %v881 = vpop.f32.mrb[0].mxu0
        %882 = vmatprep.mubr.bf16.mxu0 0
        %883 = vmatmul.mubr.bf16.gmra.mrb[0].mxu0 %v521
        %v884 = vpop.f32.mrb[0].mxu0
        %v885 = vadd.f32 %v360, %v884
        %v886 = vpop.f32.mrb[0].mxu0
        %v887 = vpop.f32.mrb[0].mxu0
        %v888 = vadd.f32 %v360, %v887
        %v889 = vpop.f32.mrb[0].mxu0
        %890 = vdwg.mxu0
        %891 = vst [vmem:[%s269] sm:$0xff] %v637
        %892 = vst [vmem:[%s269 + $0x8] sm:$0xff] %v640
        %893 = vst [vmem:[%s269 + $0x10] sm:$0xff] %v645
        %894 = vst [vmem:[%s269 + $0x18] sm:$0xff] %v648
        %895 = vst [vmem:[%s269 + $0x20] sm:$0xff] %v653
        %896 = vst [vmem:[%s269 + $0x28] sm:$0xff] %v656
        %897 = vst [vmem:[%s269 + $0x30] sm:$0xff] %v661
        %898 = vst [vmem:[%s269 + $0x38] sm:$0xff] %v664
        %899 = vst [vmem:[%s269 + $0x40] sm:$0xff] %v669
        %900 = vst [vmem:[%s269 + $0x48] sm:$0xff] %v672
        %901 = vst [vmem:[%s269 + $0x50] sm:$0xff] %v677
        %902 = vst [vmem:[%s269 + $0x58] sm:$0xff] %v680
        %903 = vst [vmem:[%s269 + $0x60] sm:$0xff] %v685
        %904 = vst [vmem:[%s269 + $0x68] sm:$0xff] %v688
        %905 = vst [vmem:[%s269 + $0x70] sm:$0xff] %v693
        %906 = vst [vmem:[%s269 + $0x78] sm:$0xff] %v696
        %907 = vst [vmem:[%s269 + $0x80] sm:$0xff] %v701
        %908 = vst [vmem:[%s269 + $0x88] sm:$0xff] %v704
        %909 = vst [vmem:[%s269 + $0x90] sm:$0xff] %v709
        %910 = vst [vmem:[%s269 + $0x98] sm:$0xff] %v712
        %911 = vst [vmem:[%s269 + $0xa0] sm:$0xff] %v717
        %912 = vst [vmem:[%s269 + $0xa8] sm:$0xff] %v720
        %913 = vst [vmem:[%s269 + $0xb0] sm:$0xff] %v725
        %914 = vst [vmem:[%s269 + $0xb8] sm:$0xff] %v728
        %915 = vst [vmem:[%s269 + $0xc0] sm:$0xff] %v733
        %916 = vst [vmem:[%s269 + $0xc8] sm:$0xff] %v736
        %917 = vst [vmem:[%s269 + $0xd0] sm:$0xff] %v741
        %918 = vst [vmem:[%s269 + $0xd8] sm:$0xff] %v744
        %919 = vst [vmem:[%s269 + $0xe0] sm:$0xff] %v749
        %920 = vst [vmem:[%s269 + $0xe8] sm:$0xff] %v752
        %921 = vst [vmem:[%s269 + $0xf0] sm:$0xff] %v757
        %922 = vst [vmem:[%s269 + $0xf8] sm:$0xff] %v760
        %923 = vst [vmem:[%s269 + $0x100] sm:$0xff] %v765
        %924 = vst [vmem:[%s269 + $0x108] sm:$0xff] %v768
        %925 = vst [vmem:[%s269 + $0x110] sm:$0xff] %v773
        %926 = vst [vmem:[%s269 + $0x118] sm:$0xff] %v776
        %927 = vst [vmem:[%s269 + $0x120] sm:$0xff] %v781
        %928 = vst [vmem:[%s269 + $0x128] sm:$0xff] %v784
        %929 = vst [vmem:[%s269 + $0x130] sm:$0xff] %v789
        %930 = vst [vmem:[%s269 + $0x138] sm:$0xff] %v792
        %931 = vst [vmem:[%s269 + $0x140] sm:$0xff] %v797
        %932 = vst [vmem:[%s269 + $0x148] sm:$0xff] %v800
        %933 = vst [vmem:[%s269 + $0x150] sm:$0xff] %v805
        %934 = vst [vmem:[%s269 + $0x158] sm:$0xff] %v808
        %935 = vst [vmem:[%s269 + $0x160] sm:$0xff] %v813
        %936 = vst [vmem:[%s269 + $0x168] sm:$0xff] %v816
        %937 = vst [vmem:[%s269 + $0x170] sm:$0xff] %v821
        %938 = vst [vmem:[%s269 + $0x178] sm:$0xff] %v824
        %939 = vst [vmem:[%s269 + $0x180] sm:$0xff] %v829
        %940 = vst [vmem:[%s269 + $0x188] sm:$0xff] %v832
        %941 = vst [vmem:[%s269 + $0x190] sm:$0xff] %v837
        %942 = vst [vmem:[%s269 + $0x198] sm:$0xff] %v840
        %943 = vst [vmem:[%s269 + $0x1a0] sm:$0xff] %v845
        %944 = vst [vmem:[%s269 + $0x1a8] sm:$0xff] %v848
        %945 = vst [vmem:[%s269 + $0x1b0] sm:$0xff] %v853
        %946 = vst [vmem:[%s269 + $0x1b8] sm:$0xff] %v856
        %947 = vst [vmem:[%s269 + $0x1c0] sm:$0xff] %v861
        %948 = vst [vmem:[%s269 + $0x1c8] sm:$0xff] %v864
        %949 = vst [vmem:[%s269 + $0x1d0] sm:$0xff] %v869
        %950 = vst [vmem:[%s269 + $0x1d8] sm:$0xff] %v872
        %951 = vst [vmem:[%s269 + $0x1e0] sm:$0xff] %v877
        %952 = vst [vmem:[%s269 + $0x1e8] sm:$0xff] %v880
        %953 = vst [vmem:[%s269 + $0x1f0] sm:$0xff] %v885
        %954 = vst [vmem:[%s269 + $0x1f8] sm:$0xff] %v888
        %s955 = sand.u32 %s131, 1
        %s956 = scalar_lea.sflag [#allocation4], %s955
        %s957 = sand.u32 %s131, 1
        %s958 = smul.addr %s957, 512
        %s959 = scalar_lea.vmem [#allocation8], %s958
        // Predicated region
        $region45: #{tpu_custom_call.1} parent=31 // pred_check
          %p960 = pneg %p141
        $region46: #{tpu_custom_call.1} parent=31 // pred_check_branch
          %962 = sbr.rel (%p960) target = $region48
        $region47: #{tpu_custom_call.1} parent=31 // pred_region
          %s963 = smul.u32 %s28, 4
          %s964 = sadd.s32 %s963, %s30
          %s965 = smul.u32 64, %s29
          %s967 = ssub.s32 8192, 8192
          %968 = vsyncadd %s956, %s967
          %s969 = smul.addr %s964, 128
          %s970 = sadd.s32 %s965, %s969
          %s971 = smul.addr %s970, 128
          %s972 = scalar_lea.hbm %s3, %s971
          %s973 = sshll.u32 %s959, 4
          %s974 = int_to_ptr.vmem [resolvable:$true] %s973
          %979 = dma.vmem_to_hbm [thread:$0]  %s974, 8192, %s972, %s956, 128, 128, 8
        $region48: #{tpu_custom_call.1} parent=31 // pred_fallthru
          _
      $region32: #{tpu_custom_call.1} parent=5 // pred_fallthru
        _
      %p980 = scmp.le.s32.totalorder 2, %s18
      // Predicated region
      $region49: #{tpu_custom_call.1} parent=5 // pred_check
        %p981 = pneg %p980
      $region50: #{tpu_custom_call.1} parent=5 // pred_check_branch
        %983 = sbr.rel (%p981) target = $region52
      $region51: #{tpu_custom_call.1} parent=5 // pred_region
        %s984 = ssub.s32 %s18, 2
        // Predicated region
        $region53: #{tpu_custom_call.1} parent=51 // pred_check
          %p985 = pneg %p147
        $region54: #{tpu_custom_call.1} parent=51 // pred_check_branch
          %987 = sbr.rel (%p985) target = $region56
        $region55: #{tpu_custom_call.1} parent=51 // pred_region
          %s988 = sand.u32 %s132, 1
          %s989 = scalar_lea.sflag [#allocation4], %s988
          %s990 = sand.u32 %s132, 1
          %s991 = smul.addr %s990, 512
          %s992 = scalar_lea.vmem [#allocation8], %s991
          %993 = dma.done %s989, 8192
        $region56: #{tpu_custom_call.1} parent=51 // pred_fallthru
          _
      $region52: #{tpu_custom_call.1} parent=5 // pred_fallthru
        _
    $region6: #{tpu_custom_call.1} parent=1 // loop_footer
      %s22 = sadd.s32 1, %s18
    $region7: #{tpu_custom_call.1} parent=1 // loop_footer_branch
      %17 = sbr.rel target = $region3
    $region8: #{tpu_custom_call.1} parent=1 // loop_exit
      _
    %994 = vsyncpa [#allocation3], 1
    %s995 = scalar_lea.sflag [#allocation3], 1
    %996 = vsyncpa %s995, 1
    %997 = vsyncpa [#allocation6], 1
    %s998 = scalar_lea.sflag [#allocation6], 1
    %999 = vsyncpa %s998, 1
    %1000 = vsyncpa [#allocation4], 1
    %s1001 = scalar_lea.sflag [#allocation4], 1
    %1002 = vsyncpa %s1001, 1

</llo_original>
